<compile_context>
chip_gen: v7x
topology: tpu7x:2x2x1
jax: 0.10.0
libtpu: 0.0.40
codegen_flags: <defaults>
</compile_context>

<pallas_src>
import functools

import numpy as np
import jax
import jax.numpy as jnp
from jax.experimental import pallas as pl
from jax.experimental.pallas import tpu as pltpu

_BN_EPS = 1e-5
_LAYER_CFG = ((4, 2, 1), (4, 2, 1), (4, 2, 1), (1, 1, 0))  # (kernel, stride, pad)


# ----------------------------------------------------------------------------
# Fused kernel: one grid step == one image, all 4 conv+BN(+ReLU) layers.
# ----------------------------------------------------------------------------
def _conv_bn(x2, s_ref, w_ref, bias_ref, *, relu, dot_dtype):
    """One conv+BN layer on a (H, W*Cin) activation value, fully in VMEM."""
    if s_ref is None:  # 1x1 conv, stride 1: no H-tap selection needed
        acc = jnp.dot(x2.astype(dot_dtype), w_ref[...],
                      preferred_element_type=jnp.float32)
    else:
        acc = None
        for i in range(s_ref.shape[0]):  # static unroll over k_h taps
            # Row (H-tap) selection as an exact f32 matmul: (Ho,H) @ (H,W*Cin)
            sel = jnp.dot(s_ref[i], x2, preferred_element_type=jnp.float32)
            # Channel/W-tap mixing with pre-packed, BN-folded weights (bf16 MXU).
            part = jnp.dot(sel.astype(dot_dtype), w_ref[i],
                           preferred_element_type=jnp.float32)
            acc = part if acc is None else acc + part
    y = acc + bias_ref[...]  # (1, Wo*Cout) broadcast; BN bias + conv bias folded
    return jnp.maximum(y, 0.0) if relu else y


def _encoder_kernel(x_ref, s1, w1, c1, s2, w2, c2, s3, w3, c3, w4, c4,
                    o_ref, *, dot_dtype):
    x = x_ref[0]                                                # (H, W), Cin == 1
    h = _conv_bn(x, s1, w1, c1, relu=True, dot_dtype=dot_dtype)   # (8, 8*16)
    h = _conv_bn(h, s2, w2, c2, relu=True, dot_dtype=dot_dtype)   # (4, 4*32)
    h = _conv_bn(h, s3, w3, c3, relu=True, dot_dtype=dot_dtype)   # (2, 2*48)
    h = _conv_bn(h, None, w4, c4, relu=False, dot_dtype=dot_dtype)  # (2, 2*C)
    o_ref[0] = h


# ----------------------------------------------------------------------------
# One-time parameter packing (host-side): fold BN, bake conv tap structure
# into MXU-friendly matrices.
# ----------------------------------------------------------------------------
def pack_layer(layer_params, H, W, k, s, p, dot_dtype):
    w, b, gamma, beta, run_mean, run_var = [
        np.asarray(t, dtype=np.float32) for t in layer_params]
    Cout, Cin = int(w.shape[0]), int(w.shape[1])
    Ho = (H + 2 * p - k) // s + 1
    Wo = (W + 2 * p - k) // s + 1

    scale = gamma / np.sqrt(run_var + _BN_EPS)          # BN eval-mode fold
    bias = beta + scale * (b - run_mean)

    # H-tap selection: (S[i] @ X)[oh, :] = X[s*oh + i - p, :]  (0 if in padding)
    S = np.zeros((k, Ho, H), np.float32)
    for i in range(k):
        for oh in range(Ho):
            h_in = s * oh + i - p
            if 0 <= h_in < H:
                S[i, oh, h_in] = 1.0

    # Packed weights with BN scale folded in:
    #   B[i, w_in*Cin + c, ow*Cout + co] = scale[co] * w[co, c, i, j],
    #   j = w_in - (s*ow - p); W-taps falling into padding are simply absent.
    w_t = np.transpose(w, (2, 3, 1, 0)) * scale[None, None, None, :]  # (ki,kj,Cin,Cout)
    B = np.zeros((k, W * Cin, Wo * Cout), np.float32)
    for i in range(k):
        for ow in range(Wo):
            for j in range(k):
                w_in = s * ow + j - p
                if 0 <= w_in < W:
                    B[i, w_in * Cin:(w_in + 1) * Cin,
                      ow * Cout:(ow + 1) * Cout] = w_t[i, j]

    bias_row = np.tile(bias, Wo).reshape(1, Wo * Cout)
    packed = (jnp.asarray(S),
              jnp.asarray(B).astype(dot_dtype),
              jnp.asarray(bias_row))
    return packed, (Ho, Wo, Cout)


def pack_encoder_params(params, H, W, dot_dtype=jnp.bfloat16):
    ws = []
    h_sp, w_sp, cout = H, W, 1
    for (k, s, p), lp in zip(_LAYER_CFG, params):
        (S, B, bias_row), (h_sp, w_sp, cout) = pack_layer(
            lp, h_sp, w_sp, k, s, p, dot_dtype)
        if k > 1:
            ws.append(S)
            ws.append(B)
        else:
            ws.append(B[0])      # 1x1 conv: no H-tap selection, single B matrix
        ws.append(bias_row)
    return tuple(ws), (h_sp, w_sp, cout)


# ----------------------------------------------------------------------------
# Forward pass
# ----------------------------------------------------------------------------
@functools.partial(jax.jit, static_argnums=(2,))
def encoder_forward(x_nchw, packed_ws, out_dims):
    """x_nchw: (N, 1, H, W) float32 -> (N, C, Ho, Wo) float32 (PyTorch NCHW)."""
    Ho, Wo, Cf = out_dims
    N, cin, H, W = x_nchw.shape
    assert cin == 1, "Encoder expects a single input channel"
    x2 = x_nchw.reshape(N, H, W).astype(jnp.float32)   # (H, W*Cin) layout, Cin=1

    dot_dtype = packed_ws[1].dtype                     # dtype of packed B matrices

    in_specs = [pl.BlockSpec((1, H, W), lambda n: (n, 0, 0))]
    for a in packed_ws:
        if a.ndim == 3:
            in_specs.append(pl.BlockSpec(a.shape, lambda n: (0, 0, 0)))
        else:
            in_specs.append(pl.BlockSpec(a.shape, lambda n: (0, 0)))

    out2 = pl.pallas_call(
        functools.partial(_encoder_kernel, dot_dtype=dot_dtype),
        out_shape=jax.ShapeDtypeStruct((N, Ho, Wo * Cf), jnp.float32),
        grid=(N,),
        in_specs=in_specs,
        out_specs=pl.BlockSpec((1, Ho, Wo * Cf), lambda n: (n, 0, 0)),
        compiler_params=pltpu.CompilerParams(
            dimension_semantics=("parallel",)),
    )(x2, *packed_ws)

    # (N, Ho, Wo*C) -> (N, C, Ho, Wo) to match PyTorch output layout.
    return out2.reshape(N, Ho, Wo, Cf).transpose(0, 3, 1, 2)


# ----------------------------------------------------------------------------
# Deterministic parameter init (mirrors PyTorch layer shapes)
# ----------------------------------------------------------------------------
def init_layer_params(key, cin, cout, k):
    k1, k2, k3, k4, k5, k6 = jax.random.split(key, 6)
    fan_in = cin * k * k
    bound = 1.0 / jnp.sqrt(jnp.float32(fan_in))
    w = jax.random.uniform(k1, (cout, cin, k, k), jnp.float32, -bound, bound)
    b = jax.random.uniform(k2, (cout,), jnp.float32, -bound, bound)
    gamma = jax.random.uniform(k3, (cout,), jnp.float32, 0.5, 1.5)
    beta = jax.random.uniform(k4, (cout,), jnp.float32, -0.1, 0.1)
    run_mean = 0.1 * jax.random.normal(k5, (cout,), jnp.float32)
    run_var = jax.random.uniform(k6, (cout,), jnp.float32, 0.5, 1.5)
    return (w, b, gamma, beta, run_mean, run_var)


def init_encoder_params(key, encoder_output_size):
    ks = jax.random.split(key, 4)
    return [
        init_layer_params(ks[0], 1, 16, 4),
        init_layer_params(ks[1], 16, 32, 4),
        init_layer_params(ks[2], 32, 48, 4),
        init_layer_params(ks[3], 48, encoder_output_size, 1),
    ]


if __name__ == "__main__":
    key = jax.random.PRNGKey(0)
    k_x, k_p = jax.random.split(key)

    encoder_output_size = 32
    x = jax.random.normal(k_x, (2, 1, 16, 16), jnp.float32)  # NCHW, like PyTorch
    params = init_encoder_params(k_p, encoder_output_size)

    # One-time packing: BN folded into weights, conv taps baked into MXU matrices.
    packed_ws, out_dims = pack_encoder_params(params, 16, 16,
                                              dot_dtype=jnp.bfloat16)

    out = encoder_forward(x, packed_ws, out_dims)
    out = jax.block_until_ready(out)

    assert out.shape == (2, encoder_output_size, 2, 2), out.shape
    assert out.dtype == jnp.float32
    assert bool(jnp.all(jnp.isfinite(out)))
    print("KERNEL_OK")
</pallas_src>

<mosaic_0001>
module attributes {stable_mosaic.version = 11 : i64} {
  func.func @_encoder_kernel(%arg0: i32, %arg1: memref<1x16x16xf32, #tpu.memory_space<vmem>>, %arg2: memref<4x8x16xf32, #tpu.memory_space<vmem>>, %arg3: memref<4x16x128xbf16, #tpu.memory_space<vmem>>, %arg4: memref<1x128xf32, #tpu.memory_space<vmem>>, %arg5: memref<4x4x8xf32, #tpu.memory_space<vmem>>, %arg6: memref<4x128x128xbf16, #tpu.memory_space<vmem>>, %arg7: memref<1x128xf32, #tpu.memory_space<vmem>>, %arg8: memref<4x2x4xf32, #tpu.memory_space<vmem>>, %arg9: memref<4x128x96xbf16, #tpu.memory_space<vmem>>, %arg10: memref<1x96xf32, #tpu.memory_space<vmem>>, %arg11: memref<96x64xbf16, #tpu.memory_space<vmem>>, %arg12: memref<1x64xf32, #tpu.memory_space<vmem>>, %arg13: memref<1x2x64xf32, #tpu.memory_space<vmem>>) attributes {dimension_semantics = [#tpu.dimension_semantics<parallel>], iteration_bounds = array<i64: 2>, scalar_prefetch = 0 : i64, scratch_operands = 0 : i64, tpu.core_type = #tpu.core_type<tc>, window_params = [{transform_indices = @transform_0, window_bounds = array<i64: 1, 16, 16>}, {pipeline_mode = #tpu.pipeline_mode<synchronous>, transform_indices = @transform_1, window_bounds = array<i64: 4, 8, 16>}, {pipeline_mode = #tpu.pipeline_mode<synchronous>, transform_indices = @transform_2, window_bounds = array<i64: 4, 16, 128>}, {pipeline_mode = #tpu.pipeline_mode<synchronous>, transform_indices = @transform_3, window_bounds = array<i64: 1, 128>}, {pipeline_mode = #tpu.pipeline_mode<synchronous>, transform_indices = @transform_4, window_bounds = array<i64: 4, 4, 8>}, {pipeline_mode = #tpu.pipeline_mode<synchronous>, transform_indices = @transform_5, window_bounds = array<i64: 4, 128, 128>}, {pipeline_mode = #tpu.pipeline_mode<synchronous>, transform_indices = @transform_6, window_bounds = array<i64: 1, 128>}, {pipeline_mode = #tpu.pipeline_mode<synchronous>, transform_indices = @transform_7, window_bounds = array<i64: 4, 2, 4>}, {pipeline_mode = #tpu.pipeline_mode<synchronous>, transform_indices = @transform_8, window_bounds = array<i64: 4, 128, 96>}, {pipeline_mode = #tpu.pipeline_mode<synchronous>, transform_indices = @transform_9, window_bounds = array<i64: 1, 96>}, {pipeline_mode = #tpu.pipeline_mode<synchronous>, transform_indices = @transform_10, window_bounds = array<i64: 96, 64>}, {pipeline_mode = #tpu.pipeline_mode<synchronous>, transform_indices = @transform_11, window_bounds = array<i64: 1, 64>}, {transform_indices = @transform_12, window_bounds = array<i64: 1, 2, 64>}]} {
    %c0 = arith.constant 0 : index
    %c0_0 = arith.constant 0 : index
    %c0_1 = arith.constant 0 : index
    %0 = vector.load %arg1[%c0, %c0_0, %c0_1] : memref<1x16x16xf32, #tpu.memory_space<vmem>>, vector<1x16x16xf32>
    %1 = vector.shape_cast %0 : vector<1x16x16xf32> to vector<16x16xf32>
    %c0_2 = arith.constant 0 : index
    %c0_3 = arith.constant 0 : index
    %c0_4 = arith.constant 0 : index
    %2 = vector.load %arg2[%c0_2, %c0_3, %c0_4] : memref<4x8x16xf32, #tpu.memory_space<vmem>>, vector<1x8x16xf32>
    %3 = vector.shape_cast %2 : vector<1x8x16xf32> to vector<8x16xf32>
    %cst = arith.constant dense<0.000000e+00> : vector<8x16xf32>
    %4 = tpu.matmul %3, %1, %cst {dimension_numbers = #tpu.dot_dimension_numbers<[1], [0], [0], [1], [0, 0, 1, 1], [], []>} : vector<8x16xf32>, vector<16x16xf32>, vector<8x16xf32> -> vector<8x16xf32>
    %5 = arith.truncf %4 : vector<8x16xf32> to vector<8x16xbf16>
    %c0_5 = arith.constant 0 : index
    %c0_6 = arith.constant 0 : index
    %c0_7 = arith.constant 0 : index
    %6 = vector.load %arg3[%c0_5, %c0_6, %c0_7] : memref<4x16x128xbf16, #tpu.memory_space<vmem>>, vector<1x16x128xbf16>
    %7 = vector.shape_cast %6 : vector<1x16x128xbf16> to vector<16x128xbf16>
    %cst_8 = arith.constant dense<0.000000e+00> : vector<8x128xf32>
    %8 = tpu.matmul %5, %7, %cst_8 {dimension_numbers = #tpu.dot_dimension_numbers<[1], [0], [0], [1], [0, 0, 1, 1], [], []>} : vector<8x16xbf16>, vector<16x128xbf16>, vector<8x128xf32> -> vector<8x128xf32>
    %c1 = arith.constant 1 : index
    %c0_9 = arith.constant 0 : index
    %c0_10 = arith.constant 0 : index
    %9 = vector.load %arg2[%c1, %c0_9, %c0_10] : memref<4x8x16xf32, #tpu.memory_space<vmem>>, vector<1x8x16xf32>
    %10 = vector.shape_cast %9 : vector<1x8x16xf32> to vector<8x16xf32>
    %cst_11 = arith.constant dense<0.000000e+00> : vector<8x16xf32>
    %11 = tpu.matmul %10, %1, %cst_11 {dimension_numbers = #tpu.dot_dimension_numbers<[1], [0], [0], [1], [0, 0, 1, 1], [], []>} : vector<8x16xf32>, vector<16x16xf32>, vector<8x16xf32> -> vector<8x16xf32>
    %12 = arith.truncf %11 : vector<8x16xf32> to vector<8x16xbf16>
    %c1_12 = arith.constant 1 : index
    %c0_13 = arith.constant 0 : index
    %c0_14 = arith.constant 0 : index
    %13 = vector.load %arg3[%c1_12, %c0_13, %c0_14] : memref<4x16x128xbf16, #tpu.memory_space<vmem>>, vector<1x16x128xbf16>
    %14 = vector.shape_cast %13 : vector<1x16x128xbf16> to vector<16x128xbf16>
    %cst_15 = arith.constant dense<0.000000e+00> : vector<8x128xf32>
    %15 = tpu.matmul %12, %14, %cst_15 {dimension_numbers = #tpu.dot_dimension_numbers<[1], [0], [0], [1], [0, 0, 1, 1], [], []>} : vector<8x16xbf16>, vector<16x128xbf16>, vector<8x128xf32> -> vector<8x128xf32>
    %16 = arith.addf %8, %15 : vector<8x128xf32>
    %c2 = arith.constant 2 : index
    %c0_16 = arith.constant 0 : index
    %c0_17 = arith.constant 0 : index
    %17 = vector.load %arg2[%c2, %c0_16, %c0_17] : memref<4x8x16xf32, #tpu.memory_space<vmem>>, vector<1x8x16xf32>
    %18 = vector.shape_cast %17 : vector<1x8x16xf32> to vector<8x16xf32>
    %cst_18 = arith.constant dense<0.000000e+00> : vector<8x16xf32>
    %19 = tpu.matmul %18, %1, %cst_18 {dimension_numbers = #tpu.dot_dimension_numbers<[1], [0], [0], [1], [0, 0, 1, 1], [], []>} : vector<8x16xf32>, vector<16x16xf32>, vector<8x16xf32> -> vector<8x16xf32>
    %20 = arith.truncf %19 : vector<8x16xf32> to vector<8x16xbf16>
    %c2_19 = arith.constant 2 : index
    %c0_20 = arith.constant 0 : index
    %c0_21 = arith.constant 0 : index
    %21 = vector.load %arg3[%c2_19, %c0_20, %c0_21] : memref<4x16x128xbf16, #tpu.memory_space<vmem>>, vector<1x16x128xbf16>
    %22 = vector.shape_cast %21 : vector<1x16x128xbf16> to vector<16x128xbf16>
    %cst_22 = arith.constant dense<0.000000e+00> : vector<8x128xf32>
    %23 = tpu.matmul %20, %22, %cst_22 {dimension_numbers = #tpu.dot_dimension_numbers<[1], [0], [0], [1], [0, 0, 1, 1], [], []>} : vector<8x16xbf16>, vector<16x128xbf16>, vector<8x128xf32> -> vector<8x128xf32>
    %24 = arith.addf %16, %23 : vector<8x128xf32>
    %c3 = arith.constant 3 : index
    %c0_23 = arith.constant 0 : index
    %c0_24 = arith.constant 0 : index
    %25 = vector.load %arg2[%c3, %c0_23, %c0_24] : memref<4x8x16xf32, #tpu.memory_space<vmem>>, vector<1x8x16xf32>
    %26 = vector.shape_cast %25 : vector<1x8x16xf32> to vector<8x16xf32>
    %cst_25 = arith.constant dense<0.000000e+00> : vector<8x16xf32>
    %27 = tpu.matmul %26, %1, %cst_25 {dimension_numbers = #tpu.dot_dimension_numbers<[1], [0], [0], [1], [0, 0, 1, 1], [], []>} : vector<8x16xf32>, vector<16x16xf32>, vector<8x16xf32> -> vector<8x16xf32>
    %28 = arith.truncf %27 : vector<8x16xf32> to vector<8x16xbf16>
    %c3_26 = arith.constant 3 : index
    %c0_27 = arith.constant 0 : index
    %c0_28 = arith.constant 0 : index
    %29 = vector.load %arg3[%c3_26, %c0_27, %c0_28] : memref<4x16x128xbf16, #tpu.memory_space<vmem>>, vector<1x16x128xbf16>
    %30 = vector.shape_cast %29 : vector<1x16x128xbf16> to vector<16x128xbf16>
    %cst_29 = arith.constant dense<0.000000e+00> : vector<8x128xf32>
    %31 = tpu.matmul %28, %30, %cst_29 {dimension_numbers = #tpu.dot_dimension_numbers<[1], [0], [0], [1], [0, 0, 1, 1], [], []>} : vector<8x16xbf16>, vector<16x128xbf16>, vector<8x128xf32> -> vector<8x128xf32>
    %32 = arith.addf %24, %31 : vector<8x128xf32>
    %c0_30 = arith.constant 0 : index
    %c0_31 = arith.constant 0 : index
    %33 = vector.load %arg4[%c0_30, %c0_31] : memref<1x128xf32, #tpu.memory_space<vmem>>, vector<1x128xf32>
    %34 = vector.broadcast %33 : vector<1x128xf32> to vector<8x128xf32>
    %35 = arith.addf %32, %34 : vector<8x128xf32>
    %cst_32 = arith.constant 0.000000e+00 : f32
    %36 = vector.broadcast %cst_32 : f32 to vector<8x128xf32>
    %37 = arith.maximumf %35, %36 : vector<8x128xf32>
    %c0_33 = arith.constant 0 : index
    %c0_34 = arith.constant 0 : index
    %c0_35 = arith.constant 0 : index
    %38 = vector.load %arg5[%c0_33, %c0_34, %c0_35] : memref<4x4x8xf32, #tpu.memory_space<vmem>>, vector<1x4x8xf32>
    %39 = vector.shape_cast %38 : vector<1x4x8xf32> to vector<4x8xf32>
    %cst_36 = arith.constant dense<0.000000e+00> : vector<4x128xf32>
    %40 = tpu.matmul %39, %37, %cst_36 {dimension_numbers = #tpu.dot_dimension_numbers<[1], [0], [0], [1], [0, 0, 1, 1], [], []>} : vector<4x8xf32>, vector<8x128xf32>, vector<4x128xf32> -> vector<4x128xf32>
    %41 = arith.truncf %40 : vector<4x128xf32> to vector<4x128xbf16>
    %c0_37 = arith.constant 0 : index
    %c0_38 = arith.constant 0 : index
    %c0_39 = arith.constant 0 : index
    %42 = vector.load %arg6[%c0_37, %c0_38, %c0_39] : memref<4x128x128xbf16, #tpu.memory_space<vmem>>, vector<1x128x128xbf16>
    %43 = vector.shape_cast %42 : vector<1x128x128xbf16> to vector<128x128xbf16>
    %cst_40 = arith.constant dense<0.000000e+00> : vector<4x128xf32>
    %44 = tpu.matmul %41, %43, %cst_40 {dimension_numbers = #tpu.dot_dimension_numbers<[1], [0], [0], [1], [0, 0, 1, 1], [], []>} : vector<4x128xbf16>, vector<128x128xbf16>, vector<4x128xf32> -> vector<4x128xf32>
    %c1_41 = arith.constant 1 : index
    %c0_42 = arith.constant 0 : index
    %c0_43 = arith.constant 0 : index
    %45 = vector.load %arg5[%c1_41, %c0_42, %c0_43] : memref<4x4x8xf32, #tpu.memory_space<vmem>>, vector<1x4x8xf32>
    %46 = vector.shape_cast %45 : vector<1x4x8xf32> to vector<4x8xf32>
    %cst_44 = arith.constant dense<0.000000e+00> : vector<4x128xf32>
    %47 = tpu.matmul %46, %37, %cst_44 {dimension_numbers = #tpu.dot_dimension_numbers<[1], [0], [0], [1], [0, 0, 1, 1], [], []>} : vector<4x8xf32>, vector<8x128xf32>, vector<4x128xf32> -> vector<4x128xf32>
    %48 = arith.truncf %47 : vector<4x128xf32> to vector<4x128xbf16>
    %c1_45 = arith.constant 1 : index
    %c0_46 = arith.constant 0 : index
    %c0_47 = arith.constant 0 : index
    %49 = vector.load %arg6[%c1_45, %c0_46, %c0_47] : memref<4x128x128xbf16, #tpu.memory_space<vmem>>, vector<1x128x128xbf16>
    %50 = vector.shape_cast %49 : vector<1x128x128xbf16> to vector<128x128xbf16>
    %cst_48 = arith.constant dense<0.000000e+00> : vector<4x128xf32>
    %51 = tpu.matmul %48, %50, %cst_48 {dimension_numbers = #tpu.dot_dimension_numbers<[1], [0], [0], [1], [0, 0, 1, 1], [], []>} : vector<4x128xbf16>, vector<128x128xbf16>, vector<4x128xf32> -> vector<4x128xf32>
    %52 = arith.addf %44, %51 : vector<4x128xf32>
    %c2_49 = arith.constant 2 : index
    %c0_50 = arith.constant 0 : index
    %c0_51 = arith.constant 0 : index
    %53 = vector.load %arg5[%c2_49, %c0_50, %c0_51] : memref<4x4x8xf32, #tpu.memory_space<vmem>>, vector<1x4x8xf32>
    %54 = vector.shape_cast %53 : vector<1x4x8xf32> to vector<4x8xf32>
    %cst_52 = arith.constant dense<0.000000e+00> : vector<4x128xf32>
    %55 = tpu.matmul %54, %37, %cst_52 {dimension_numbers = #tpu.dot_dimension_numbers<[1], [0], [0], [1], [0, 0, 1, 1], [], []>} : vector<4x8xf32>, vector<8x128xf32>, vector<4x128xf32> -> vector<4x128xf32>
    %56 = arith.truncf %55 : vector<4x128xf32> to vector<4x128xbf16>
    %c2_53 = arith.constant 2 : index
    %c0_54 = arith.constant 0 : index
    %c0_55 = arith.constant 0 : index
    %57 = vector.load %arg6[%c2_53, %c0_54, %c0_55] : memref<4x128x128xbf16, #tpu.memory_space<vmem>>, vector<1x128x128xbf16>
    %58 = vector.shape_cast %57 : vector<1x128x128xbf16> to vector<128x128xbf16>
    %cst_56 = arith.constant dense<0.000000e+00> : vector<4x128xf32>
    %59 = tpu.matmul %56, %58, %cst_56 {dimension_numbers = #tpu.dot_dimension_numbers<[1], [0], [0], [1], [0, 0, 1, 1], [], []>} : vector<4x128xbf16>, vector<128x128xbf16>, vector<4x128xf32> -> vector<4x128xf32>
    %60 = arith.addf %52, %59 : vector<4x128xf32>
    %c3_57 = arith.constant 3 : index
    %c0_58 = arith.constant 0 : index
    %c0_59 = arith.constant 0 : index
    %61 = vector.load %arg5[%c3_57, %c0_58, %c0_59] : memref<4x4x8xf32, #tpu.memory_space<vmem>>, vector<1x4x8xf32>
    %62 = vector.shape_cast %61 : vector<1x4x8xf32> to vector<4x8xf32>
    %cst_60 = arith.constant dense<0.000000e+00> : vector<4x128xf32>
    %63 = tpu.matmul %62, %37, %cst_60 {dimension_numbers = #tpu.dot_dimension_numbers<[1], [0], [0], [1], [0, 0, 1, 1], [], []>} : vector<4x8xf32>, vector<8x128xf32>, vector<4x128xf32> -> vector<4x128xf32>
    %64 = arith.truncf %63 : vector<4x128xf32> to vector<4x128xbf16>
    %c3_61 = arith.constant 3 : index
    %c0_62 = arith.constant 0 : index
    %c0_63 = arith.constant 0 : index
    %65 = vector.load %arg6[%c3_61, %c0_62, %c0_63] : memref<4x128x128xbf16, #tpu.memory_space<vmem>>, vector<1x128x128xbf16>
    %66 = vector.shape_cast %65 : vector<1x128x128xbf16> to vector<128x128xbf16>
    %cst_64 = arith.constant dense<0.000000e+00> : vector<4x128xf32>
    %67 = tpu.matmul %64, %66, %cst_64 {dimension_numbers = #tpu.dot_dimension_numbers<[1], [0], [0], [1], [0, 0, 1, 1], [], []>} : vector<4x128xbf16>, vector<128x128xbf16>, vector<4x128xf32> -> vector<4x128xf32>
    %68 = arith.addf %60, %67 : vector<4x128xf32>
    %c0_65 = arith.constant 0 : index
    %c0_66 = arith.constant 0 : index
    %69 = vector.load %arg7[%c0_65, %c0_66] : memref<1x128xf32, #tpu.memory_space<vmem>>, vector<1x128xf32>
    %70 = vector.broadcast %69 : vector<1x128xf32> to vector<4x128xf32>
    %71 = arith.addf %68, %70 : vector<4x128xf32>
    %cst_67 = arith.constant 0.000000e+00 : f32
    %72 = vector.broadcast %cst_67 : f32 to vector<4x128xf32>
    %73 = arith.maximumf %71, %72 : vector<4x128xf32>
    %c0_68 = arith.constant 0 : index
    %c0_69 = arith.constant 0 : index
    %c0_70 = arith.constant 0 : index
    %74 = vector.load %arg8[%c0_68, %c0_69, %c0_70] : memref<4x2x4xf32, #tpu.memory_space<vmem>>, vector<1x2x4xf32>
    %75 = vector.shape_cast %74 : vector<1x2x4xf32> to vector<2x4xf32>
    %cst_71 = arith.constant dense<0.000000e+00> : vector<2x128xf32>
    %76 = tpu.matmul %75, %73, %cst_71 {dimension_numbers = #tpu.dot_dimension_numbers<[1], [0], [0], [1], [0, 0, 1, 1], [], []>} : vector<2x4xf32>, vector<4x128xf32>, vector<2x128xf32> -> vector<2x128xf32>
    %77 = arith.truncf %76 : vector<2x128xf32> to vector<2x128xbf16>
    %c0_72 = arith.constant 0 : index
    %c0_73 = arith.constant 0 : index
    %c0_74 = arith.constant 0 : index
    %78 = vector.load %arg9[%c0_72, %c0_73, %c0_74] : memref<4x128x96xbf16, #tpu.memory_space<vmem>>, vector<1x128x96xbf16>
    %79 = vector.shape_cast %78 : vector<1x128x96xbf16> to vector<128x96xbf16>
    %cst_75 = arith.constant dense<0.000000e+00> : vector<2x96xf32>
    %80 = tpu.matmul %77, %79, %cst_75 {dimension_numbers = #tpu.dot_dimension_numbers<[1], [0], [0], [1], [0, 0, 1, 1], [], []>} : vector<2x128xbf16>, vector<128x96xbf16>, vector<2x96xf32> -> vector<2x96xf32>
    %c1_76 = arith.constant 1 : index
    %c0_77 = arith.constant 0 : index
    %c0_78 = arith.constant 0 : index
    %81 = vector.load %arg8[%c1_76, %c0_77, %c0_78] : memref<4x2x4xf32, #tpu.memory_space<vmem>>, vector<1x2x4xf32>
    %82 = vector.shape_cast %81 : vector<1x2x4xf32> to vector<2x4xf32>
    %cst_79 = arith.constant dense<0.000000e+00> : vector<2x128xf32>
    %83 = tpu.matmul %82, %73, %cst_79 {dimension_numbers = #tpu.dot_dimension_numbers<[1], [0], [0], [1], [0, 0, 1, 1], [], []>} : vector<2x4xf32>, vector<4x128xf32>, vector<2x128xf32> -> vector<2x128xf32>
    %84 = arith.truncf %83 : vector<2x128xf32> to vector<2x128xbf16>
    %c1_80 = arith.constant 1 : index
    %c0_81 = arith.constant 0 : index
    %c0_82 = arith.constant 0 : index
    %85 = vector.load %arg9[%c1_80, %c0_81, %c0_82] : memref<4x128x96xbf16, #tpu.memory_space<vmem>>, vector<1x128x96xbf16>
    %86 = vector.shape_cast %85 : vector<1x128x96xbf16> to vector<128x96xbf16>
    %cst_83 = arith.constant dense<0.000000e+00> : vector<2x96xf32>
    %87 = tpu.matmul %84, %86, %cst_83 {dimension_numbers = #tpu.dot_dimension_numbers<[1], [0], [0], [1], [0, 0, 1, 1], [], []>} : vector<2x128xbf16>, vector<128x96xbf16>, vector<2x96xf32> -> vector<2x96xf32>
    %88 = arith.addf %80, %87 : vector<2x96xf32>
    %c2_84 = arith.constant 2 : index
    %c0_85 = arith.constant 0 : index
    %c0_86 = arith.constant 0 : index
    %89 = vector.load %arg8[%c2_84, %c0_85, %c0_86] : memref<4x2x4xf32, #tpu.memory_space<vmem>>, vector<1x2x4xf32>
    %90 = vector.shape_cast %89 : vector<1x2x4xf32> to vector<2x4xf32>
    %cst_87 = arith.constant dense<0.000000e+00> : vector<2x128xf32>
    %91 = tpu.matmul %90, %73, %cst_87 {dimension_numbers = #tpu.dot_dimension_numbers<[1], [0], [0], [1], [0, 0, 1, 1], [], []>} : vector<2x4xf32>, vector<4x128xf32>, vector<2x128xf32> -> vector<2x128xf32>
    %92 = arith.truncf %91 : vector<2x128xf32> to vector<2x128xbf16>
    %c2_88 = arith.constant 2 : index
    %c0_89 = arith.constant 0 : index
    %c0_90 = arith.constant 0 : index
    %93 = vector.load %arg9[%c2_88, %c0_89, %c0_90] : memref<4x128x96xbf16, #tpu.memory_space<vmem>>, vector<1x128x96xbf16>
    %94 = vector.shape_cast %93 : vector<1x128x96xbf16> to vector<128x96xbf16>
    %cst_91 = arith.constant dense<0.000000e+00> : vector<2x96xf32>
    %95 = tpu.matmul %92, %94, %cst_91 {dimension_numbers = #tpu.dot_dimension_numbers<[1], [0], [0], [1], [0, 0, 1, 1], [], []>} : vector<2x128xbf16>, vector<128x96xbf16>, vector<2x96xf32> -> vector<2x96xf32>
    %96 = arith.addf %88, %95 : vector<2x96xf32>
    %c3_92 = arith.constant 3 : index
    %c0_93 = arith.constant 0 : index
    %c0_94 = arith.constant 0 : index
    %97 = vector.load %arg8[%c3_92, %c0_93, %c0_94] : memref<4x2x4xf32, #tpu.memory_space<vmem>>, vector<1x2x4xf32>
    %98 = vector.shape_cast %97 : vector<1x2x4xf32> to vector<2x4xf32>
    %cst_95 = arith.constant dense<0.000000e+00> : vector<2x128xf32>
    %99 = tpu.matmul %98, %73, %cst_95 {dimension_numbers = #tpu.dot_dimension_numbers<[1], [0], [0], [1], [0, 0, 1, 1], [], []>} : vector<2x4xf32>, vector<4x128xf32>, vector<2x128xf32> -> vector<2x128xf32>
    %100 = arith.truncf %99 : vector<2x128xf32> to vector<2x128xbf16>
    %c3_96 = arith.constant 3 : index
    %c0_97 = arith.constant 0 : index
    %c0_98 = arith.constant 0 : index
    %101 = vector.load %arg9[%c3_96, %c0_97, %c0_98] : memref<4x128x96xbf16, #tpu.memory_space<vmem>>, vector<1x128x96xbf16>
    %102 = vector.shape_cast %101 : vector<1x128x96xbf16> to vector<128x96xbf16>
    %cst_99 = arith.constant dense<0.000000e+00> : vector<2x96xf32>
    %103 = tpu.matmul %100, %102, %cst_99 {dimension_numbers = #tpu.dot_dimension_numbers<[1], [0], [0], [1], [0, 0, 1, 1], [], []>} : vector<2x128xbf16>, vector<128x96xbf16>, vector<2x96xf32> -> vector<2x96xf32>
    %104 = arith.addf %96, %103 : vector<2x96xf32>
    %c0_100 = arith.constant 0 : index
    %c0_101 = arith.constant 0 : index
    %105 = vector.load %arg10[%c0_100, %c0_101] : memref<1x96xf32, #tpu.memory_space<vmem>>, vector<1x96xf32>
    %106 = vector.broadcast %105 : vector<1x96xf32> to vector<2x96xf32>
    %107 = arith.addf %104, %106 : vector<2x96xf32>
    %cst_102 = arith.constant 0.000000e+00 : f32
    %108 = vector.broadcast %cst_102 : f32 to vector<2x96xf32>
    %109 = arith.maximumf %107, %108 : vector<2x96xf32>
    %110 = arith.truncf %109 : vector<2x96xf32> to vector<2x96xbf16>
    %c0_103 = arith.constant 0 : index
    %c0_104 = arith.constant 0 : index
    %111 = vector.load %arg11[%c0_103, %c0_104] : memref<96x64xbf16, #tpu.memory_space<vmem>>, vector<96x64xbf16>
    %cst_105 = arith.constant dense<0.000000e+00> : vector<2x64xf32>
    %112 = tpu.matmul %110, %111, %cst_105 {dimension_numbers = #tpu.dot_dimension_numbers<[1], [0], [0], [1], [0, 0, 1, 1], [], []>} : vector<2x96xbf16>, vector<96x64xbf16>, vector<2x64xf32> -> vector<2x64xf32>
    %c0_106 = arith.constant 0 : index
    %c0_107 = arith.constant 0 : index
    %113 = vector.load %arg12[%c0_106, %c0_107] : memref<1x64xf32, #tpu.memory_space<vmem>>, vector<1x64xf32>
    %114 = vector.broadcast %113 : vector<1x64xf32> to vector<2x64xf32>
    %115 = arith.addf %112, %114 : vector<2x64xf32>
    %c0_108 = arith.constant 0 : index
    %c0_109 = arith.constant 0 : index
    %c0_110 = arith.constant 0 : index
    %116 = vector.load %arg13[%c0_108, %c0_109, %c0_110] : memref<1x2x64xf32, #tpu.memory_space<vmem>>, vector<1x2x64xf32>
    %117 = vector.shape_cast %116 : vector<1x2x64xf32> to vector<2x64xf32>
    %118 = vector.shape_cast %115 : vector<2x64xf32> to vector<1x2x64xf32>
    tpu.vector_store %arg13[%c0_108, %c0_109, %c0_110], %118 {strides = array<i32>} : memref<1x2x64xf32, #tpu.memory_space<vmem>>, vector<1x2x64xf32>,
    return
  }
  func.func @transform_0(%arg0: i32) -> (i32, i32, i32) {
    %c0_i32 = arith.constant 0 : i32
    %c0_i32_0 = arith.constant 0 : i32
    %c0_i32_1 = arith.constant 0 : i32
    return %arg0, %c0_i32, %c0_i32_0 : i32, i32, i32
  }
  func.func @transform_1(%arg0: i32) -> (i32, i32, i32) {
    %c0_i32 = arith.constant 0 : i32
    %c0_i32_0 = arith.constant 0 : i32
    %c0_i32_1 = arith.constant 0 : i32
    %c0_i32_2 = arith.constant 0 : i32
    return %c0_i32, %c0_i32_0, %c0_i32_1 : i32, i32, i32
  }
  func.func @transform_2(%arg0: i32) -> (i32, i32, i32) {
    %c0_i32 = arith.constant 0 : i32
    %c0_i32_0 = arith.constant 0 : i32
    %c0_i32_1 = arith.constant 0 : i32
    %c0_i32_2 = arith.constant 0 : i32
    return %c0_i32, %c0_i32_0, %c0_i32_1 : i32, i32, i32
  }
  func.func @transform_3(%arg0: i32) -> (i32, i32) {
    %c0_i32 = arith.constant 0 : i32
    %c0_i32_0 = arith.constant 0 : i32
    %c0_i32_1 = arith.constant 0 : i32
    return %c0_i32, %c0_i32_0 : i32, i32
  }
  func.func @transform_4(%arg0: i32) -> (i32, i32, i32) {
    %c0_i32 = arith.constant 0 : i32
    %c0_i32_0 = arith.constant 0 : i32
    %c0_i32_1 = arith.constant 0 : i32
    %c0_i32_2 = arith.constant 0 : i32
    return %c0_i32, %c0_i32_0, %c0_i32_1 : i32, i32, i32
  }
  func.func @transform_5(%arg0: i32) -> (i32, i32, i32) {
    %c0_i32 = arith.constant 0 : i32
    %c0_i32_0 = arith.constant 0 : i32
    %c0_i32_1 = arith.constant 0 : i32
    %c0_i32_2 = arith.constant 0 : i32
    return %c0_i32, %c0_i32_0, %c0_i32_1 : i32, i32, i32
  }
  func.func @transform_6(%arg0: i32) -> (i32, i32) {
    %c0_i32 = arith.constant 0 : i32
    %c0_i32_0 = arith.constant 0 : i32
    %c0_i32_1 = arith.constant 0 : i32
    return %c0_i32, %c0_i32_0 : i32, i32
  }
  func.func @transform_7(%arg0: i32) -> (i32, i32, i32) {
    %c0_i32 = arith.constant 0 : i32
    %c0_i32_0 = arith.constant 0 : i32
    %c0_i32_1 = arith.constant 0 : i32
    %c0_i32_2 = arith.constant 0 : i32
    return %c0_i32, %c0_i32_0, %c0_i32_1 : i32, i32, i32
  }
  func.func @transform_8(%arg0: i32) -> (i32, i32, i32) {
    %c0_i32 = arith.constant 0 : i32
    %c0_i32_0 = arith.constant 0 : i32
    %c0_i32_1 = arith.constant 0 : i32
    %c0_i32_2 = arith.constant 0 : i32
    return %c0_i32, %c0_i32_0, %c0_i32_1 : i32, i32, i32
  }
  func.func @transform_9(%arg0: i32) -> (i32, i32) {
    %c0_i32 = arith.constant 0 : i32
    %c0_i32_0 = arith.constant 0 : i32
    %c0_i32_1 = arith.constant 0 : i32
    return %c0_i32, %c0_i32_0 : i32, i32
  }
  func.func @transform_10(%arg0: i32) -> (i32, i32) {
    %c0_i32 = arith.constant 0 : i32
    %c0_i32_0 = arith.constant 0 : i32
    %c0_i32_1 = arith.constant 0 : i32
    return %c0_i32, %c0_i32_0 : i32, i32
  }
  func.func @transform_11(%arg0: i32) -> (i32, i32) {
    %c0_i32 = arith.constant 0 : i32
    %c0_i32_0 = arith.constant 0 : i32
    %c0_i32_1 = arith.constant 0 : i32
    return %c0_i32, %c0_i32_0 : i32, i32
  }
  func.func @transform_12(%arg0: i32) -> (i32, i32, i32) {
    %c0_i32 = arith.constant 0 : i32
    %c0_i32_0 = arith.constant 0 : i32
    %c0_i32_1 = arith.constant 0 : i32
    return %arg0, %c0_i32, %c0_i32_0 : i32, i32, i32
  }
}

</mosaic_0001>

<llo_original>
// kernel: encoder_forward.1
$region0: #{encoder_forward.1}
  #allocation0 [shape = 'u32[]', space=smem, size = 0x4, offset = 0x4, fixed_abs, tag = 'smem constant byte address 0x4 - core index']
  #allocation1 [shape = 'u32[144,128]{1,0:T(1,128)}', space=vmem, size = 0x12000, scoped, tag = 'internal scratch']
  %s0 = inlined_call_operand.vmem [shape: f32[2,16,16], index: 0, kind: input, shape index: {}]
  %s1 = inlined_call_operand.vmem [shape: f32[4,8,16], index: 1, kind: input, shape index: {}]
  %s2 = inlined_call_operand.vmem [shape: bf16[4,16,128], index: 2, kind: input, shape index: {}]
  %s3 = inlined_call_operand.vmem [shape: f32[1,128], index: 3, kind: input, shape index: {}]
  %s4 = inlined_call_operand.vmem [shape: f32[4,4,8], index: 4, kind: input, shape index: {}]
  %s5 = inlined_call_operand.vmem [shape: bf16[4,128,128], index: 5, kind: input, shape index: {}]
  %s6 = inlined_call_operand.vmem [shape: f32[1,128], index: 6, kind: input, shape index: {}]
  %s7 = inlined_call_operand.vmem [shape: f32[4,2,4], index: 7, kind: input, shape index: {}]
  %s8 = inlined_call_operand.vmem [shape: bf16[4,128,96], index: 8, kind: input, shape index: {}]
  %s9 = inlined_call_operand.vmem [shape: f32[1,96], index: 9, kind: input, shape index: {}]
  %s10 = inlined_call_operand.vmem [shape: bf16[96,64], index: 10, kind: input, shape index: {}]
  %s11 = inlined_call_operand.vmem [shape: f32[1,64], index: 11, kind: input, shape index: {}]
  %s12 = inlined_call_operand.vmem [shape: f32[2,2,64], index: 12, kind: output, shape index: {}]
  %s13 = sld [smem:[#allocation0]]
  $region81: #{encoder_forward.1} parent=0
    _
  %s15 = ssub.s32 1, %s13
  %s16 = scalar_select 0, %s15, %s13
  loop: start=0, step=1, limit=4
  $region2: #{encoder_forward.1} parent=0 // loop_pre_header
    _
  $region3: #{encoder_forward.1} parent=0 // loop_header
    %s18 = sphi 0, %s22
    %p19 = scmp.ge.s32.totalorder %s18, 4
    %s28 = sphi 0, %s30
    %s31 = sphi 0, %s28
    %s32 = sphi 0, %s31
    %s48 = sphi 0, %s32
    %s52 = sphi 0, %s52
    %s54 = sphi 0, %s52
    %s55 = sphi 0, %s54
    %s69 = sphi 0, %s55
    %s73 = sphi 0, %s73
    %s75 = sphi 0, %s73
    %s76 = sphi 0, %s75
    %s90 = sphi 0, %s76
    %s94 = sphi 0, %s94
    %s96 = sphi 0, %s94
    %s97 = sphi 0, %s96
    %s111 = sphi 0, %s97
    %s115 = sphi 0, %s115
    %s117 = sphi 0, %s115
    %s118 = sphi 0, %s117
    %s132 = sphi 0, %s118
    %s136 = sphi 0, %s136
    %s138 = sphi 0, %s136
    %s139 = sphi 0, %s138
    %s153 = sphi 0, %s139
    %s157 = sphi 0, %s157
    %s159 = sphi 0, %s157
    %s160 = sphi 0, %s159
    %s174 = sphi 0, %s160
    %s178 = sphi 0, %s178
    %s180 = sphi 0, %s178
    %s181 = sphi 0, %s180
    %s195 = sphi 0, %s181
    %s199 = sphi 0, %s199
    %s201 = sphi 0, %s199
    %s202 = sphi 0, %s201
    %s216 = sphi 0, %s202
    %s220 = sphi 0, %s220
    %s222 = sphi 0, %s220
    %s223 = sphi 0, %s222
    %s237 = sphi 0, %s223
    %s241 = sphi 0, %s241
    %s243 = sphi 0, %s241
    %s244 = sphi 0, %s243
    %s258 = sphi 0, %s244
    %s262 = sphi 0, %s262
    %s264 = sphi 0, %s262
    %s265 = sphi 0, %s264
    %s279 = sphi 0, %s265
    %s285 = sphi 0, %s287
    %s288 = sphi 0, %s285
    %s289 = sphi 0, %s288
    %s305 = sphi 0, %s289
  $region4: #{encoder_forward.1} parent=0 // loop_header_branch
    %21 = sbr.rel (%p19) target = $region8
  $region5: #{encoder_forward.1} parent=0 // loop_body
    %s23 = ssub.s32 %s18, 1
    %s24 = ssub.s32 %s18, 2
    %s25 = sadd.s32 %s18, 1
    %s26 = ssub.s32 %s18, %s25
    %p27 = scmp.eq.s32.totalorder %s26, 0
    %s29 = sadd.s32 %s28, 1
    %s30 = scalar_select %p27, %s28, %s29
    %p33 = pneg %p27
    %p34 = scmp.eq.s32.totalorder %s18, 1
    %p35 = por %p33, %p34
    %p36 = scmp.ne.s32.totalorder %s28, %s31
    %p37 = scmp.eq.s32.totalorder %s18, 0
    %p38 = por %p36, %p37
    %p39 = scmp.ne.s32.totalorder %s28, %s31
    %p40 = scmp.eq.s32.totalorder %s23, 1
    %p41 = por %p39, %p40
    %p42 = scmp.ne.s32.totalorder %s31, %s32
    %p43 = scmp.eq.s32.totalorder %s23, 0
    %p44 = por %p42, %p43
    %p45 = scmp.ne.s32.totalorder %s31, %s32
    %p46 = scmp.eq.s32.totalorder %s24, 1
    %p47 = por %p45, %p46
    %p49 = scmp.ne.s32.totalorder %s32, %s48
    %p50 = scmp.eq.s32.totalorder %s24, 0
    %p51 = por %p49, %p50
    %s53 = sadd.s32 %s52, 1
    %p56 = scmp.eq.s32.totalorder %s18, 1
    %p57 = scmp.ne.s32.totalorder %s52, %s54
    %p58 = scmp.eq.s32.totalorder %s18, 0
    %p59 = por %p57, %p58
    %p60 = scmp.ne.s32.totalorder %s52, %s54
    %p61 = scmp.eq.s32.totalorder %s23, 1
    %p62 = por %p60, %p61
    %p63 = scmp.ne.s32.totalorder %s54, %s55
    %p64 = scmp.eq.s32.totalorder %s23, 0
    %p65 = por %p63, %p64
    %p66 = scmp.ne.s32.totalorder %s54, %s55
    %p67 = scmp.eq.s32.totalorder %s24, 1
    %p68 = por %p66, %p67
    %p70 = scmp.ne.s32.totalorder %s55, %s69
    %p71 = scmp.eq.s32.totalorder %s24, 0
    %p72 = por %p70, %p71
    %s74 = sadd.s32 %s73, 1
    %p77 = scmp.eq.s32.totalorder %s18, 1
    %p78 = scmp.ne.s32.totalorder %s73, %s75
    %p79 = scmp.eq.s32.totalorder %s18, 0
    %p80 = por %p78, %p79
    %p81 = scmp.ne.s32.totalorder %s73, %s75
    %p82 = scmp.eq.s32.totalorder %s23, 1
    %p83 = por %p81, %p82
    %p84 = scmp.ne.s32.totalorder %s75, %s76
    %p85 = scmp.eq.s32.totalorder %s23, 0
    %p86 = por %p84, %p85
    %p87 = scmp.ne.s32.totalorder %s75, %s76
    %p88 = scmp.eq.s32.totalorder %s24, 1
    %p89 = por %p87, %p88
    %p91 = scmp.ne.s32.totalorder %s76, %s90
    %p92 = scmp.eq.s32.totalorder %s24, 0
    %p93 = por %p91, %p92
    %s95 = sadd.s32 %s94, 1
    %p98 = scmp.eq.s32.totalorder %s18, 1
    %p99 = scmp.ne.s32.totalorder %s94, %s96
    %p100 = scmp.eq.s32.totalorder %s18, 0
    %p101 = por %p99, %p100
    %p102 = scmp.ne.s32.totalorder %s94, %s96
    %p103 = scmp.eq.s32.totalorder %s23, 1
    %p104 = por %p102, %p103
    %p105 = scmp.ne.s32.totalorder %s96, %s97
    %p106 = scmp.eq.s32.totalorder %s23, 0
    %p107 = por %p105, %p106
    %p108 = scmp.ne.s32.totalorder %s96, %s97
    %p109 = scmp.eq.s32.totalorder %s24, 1
    %p110 = por %p108, %p109
    %p112 = scmp.ne.s32.totalorder %s97, %s111
    %p113 = scmp.eq.s32.totalorder %s24, 0
    %p114 = por %p112, %p113
    %s116 = sadd.s32 %s115, 1
    %p119 = scmp.eq.s32.totalorder %s18, 1
    %p120 = scmp.ne.s32.totalorder %s115, %s117
    %p121 = scmp.eq.s32.totalorder %s18, 0
    %p122 = por %p120, %p121
    %p123 = scmp.ne.s32.totalorder %s115, %s117
    %p124 = scmp.eq.s32.totalorder %s23, 1
    %p125 = por %p123, %p124
    %p126 = scmp.ne.s32.totalorder %s117, %s118
    %p127 = scmp.eq.s32.totalorder %s23, 0
    %p128 = por %p126, %p127
    %p129 = scmp.ne.s32.totalorder %s117, %s118
    %p130 = scmp.eq.s32.totalorder %s24, 1
    %p131 = por %p129, %p130
    %p133 = scmp.ne.s32.totalorder %s118, %s132
    %p134 = scmp.eq.s32.totalorder %s24, 0
    %p135 = por %p133, %p134
    %s137 = sadd.s32 %s136, 1
    %p140 = scmp.eq.s32.totalorder %s18, 1
    %p141 = scmp.ne.s32.totalorder %s136, %s138
    %p142 = scmp.eq.s32.totalorder %s18, 0
    %p143 = por %p141, %p142
    %p144 = scmp.ne.s32.totalorder %s136, %s138
    %p145 = scmp.eq.s32.totalorder %s23, 1
    %p146 = por %p144, %p145
    %p147 = scmp.ne.s32.totalorder %s138, %s139
    %p148 = scmp.eq.s32.totalorder %s23, 0
    %p149 = por %p147, %p148
    %p150 = scmp.ne.s32.totalorder %s138, %s139
    %p151 = scmp.eq.s32.totalorder %s24, 1
    %p152 = por %p150, %p151
    %p154 = scmp.ne.s32.totalorder %s139, %s153
    %p155 = scmp.eq.s32.totalorder %s24, 0
    %p156 = por %p154, %p155
    %s158 = sadd.s32 %s157, 1
    %p161 = scmp.eq.s32.totalorder %s18, 1
    %p162 = scmp.ne.s32.totalorder %s157, %s159
    %p163 = scmp.eq.s32.totalorder %s18, 0
    %p164 = por %p162, %p163
    %p165 = scmp.ne.s32.totalorder %s157, %s159
    %p166 = scmp.eq.s32.totalorder %s23, 1
    %p167 = por %p165, %p166
    %p168 = scmp.ne.s32.totalorder %s159, %s160
    %p169 = scmp.eq.s32.totalorder %s23, 0
    %p170 = por %p168, %p169
    %p171 = scmp.ne.s32.totalorder %s159, %s160
    %p172 = scmp.eq.s32.totalorder %s24, 1
    %p173 = por %p171, %p172
    %p175 = scmp.ne.s32.totalorder %s160, %s174
    %p176 = scmp.eq.s32.totalorder %s24, 0
    %p177 = por %p175, %p176
    %s179 = sadd.s32 %s178, 1
    %p182 = scmp.eq.s32.totalorder %s18, 1
    %p183 = scmp.ne.s32.totalorder %s178, %s180
    %p184 = scmp.eq.s32.totalorder %s18, 0
    %p185 = por %p183, %p184
    %p186 = scmp.ne.s32.totalorder %s178, %s180
    %p187 = scmp.eq.s32.totalorder %s23, 1
    %p188 = por %p186, %p187
    %p189 = scmp.ne.s32.totalorder %s180, %s181
    %p190 = scmp.eq.s32.totalorder %s23, 0
    %p191 = por %p189, %p190
    %p192 = scmp.ne.s32.totalorder %s180, %s181
    %p193 = scmp.eq.s32.totalorder %s24, 1
    %p194 = por %p192, %p193
    %p196 = scmp.ne.s32.totalorder %s181, %s195
    %p197 = scmp.eq.s32.totalorder %s24, 0
    %p198 = por %p196, %p197
    %s200 = sadd.s32 %s199, 1
    %p203 = scmp.eq.s32.totalorder %s18, 1
    %p204 = scmp.ne.s32.totalorder %s199, %s201
    %p205 = scmp.eq.s32.totalorder %s18, 0
    %p206 = por %p204, %p205
    %p207 = scmp.ne.s32.totalorder %s199, %s201
    %p208 = scmp.eq.s32.totalorder %s23, 1
    %p209 = por %p207, %p208
    %p210 = scmp.ne.s32.totalorder %s201, %s202
    %p211 = scmp.eq.s32.totalorder %s23, 0
    %p212 = por %p210, %p211
    %p213 = scmp.ne.s32.totalorder %s201, %s202
    %p214 = scmp.eq.s32.totalorder %s24, 1
    %p215 = por %p213, %p214
    %p217 = scmp.ne.s32.totalorder %s202, %s216
    %p218 = scmp.eq.s32.totalorder %s24, 0
    %p219 = por %p217, %p218
    %s221 = sadd.s32 %s220, 1
    %p224 = scmp.eq.s32.totalorder %s18, 1
    %p225 = scmp.ne.s32.totalorder %s220, %s222
    %p226 = scmp.eq.s32.totalorder %s18, 0
    %p227 = por %p225, %p226
    %p228 = scmp.ne.s32.totalorder %s220, %s222
    %p229 = scmp.eq.s32.totalorder %s23, 1
    %p230 = por %p228, %p229
    %p231 = scmp.ne.s32.totalorder %s222, %s223
    %p232 = scmp.eq.s32.totalorder %s23, 0
    %p233 = por %p231, %p232
    %p234 = scmp.ne.s32.totalorder %s222, %s223
    %p235 = scmp.eq.s32.totalorder %s24, 1
    %p236 = por %p234, %p235
    %p238 = scmp.ne.s32.totalorder %s223, %s237
    %p239 = scmp.eq.s32.totalorder %s24, 0
    %p240 = por %p238, %p239
    %s242 = sadd.s32 %s241, 1
    %p245 = scmp.eq.s32.totalorder %s18, 1
    %p246 = scmp.ne.s32.totalorder %s241, %s243
    %p247 = scmp.eq.s32.totalorder %s18, 0
    %p248 = por %p246, %p247
    %p249 = scmp.ne.s32.totalorder %s241, %s243
    %p250 = scmp.eq.s32.totalorder %s23, 1
    %p251 = por %p249, %p250
    %p252 = scmp.ne.s32.totalorder %s243, %s244
    %p253 = scmp.eq.s32.totalorder %s23, 0
    %p254 = por %p252, %p253
    %p255 = scmp.ne.s32.totalorder %s243, %s244
    %p256 = scmp.eq.s32.totalorder %s24, 1
    %p257 = por %p255, %p256
    %p259 = scmp.ne.s32.totalorder %s244, %s258
    %p260 = scmp.eq.s32.totalorder %s24, 0
    %p261 = por %p259, %p260
    %s263 = sadd.s32 %s262, 1
    %p266 = scmp.eq.s32.totalorder %s18, 1
    %p267 = scmp.ne.s32.totalorder %s262, %s264
    %p268 = scmp.eq.s32.totalorder %s18, 0
    %p269 = por %p267, %p268
    %p270 = scmp.ne.s32.totalorder %s262, %s264
    %p271 = scmp.eq.s32.totalorder %s23, 1
    %p272 = por %p270, %p271
    %p273 = scmp.ne.s32.totalorder %s264, %s265
    %p274 = scmp.eq.s32.totalorder %s23, 0
    %p275 = por %p273, %p274
    %p276 = scmp.ne.s32.totalorder %s264, %s265
    %p277 = scmp.eq.s32.totalorder %s24, 1
    %p278 = por %p276, %p277
    %p280 = scmp.ne.s32.totalorder %s265, %s279
    %p281 = scmp.eq.s32.totalorder %s24, 0
    %p282 = por %p280, %p281
    %s283 = ssub.s32 %s18, %s25
    %p284 = scmp.eq.s32.totalorder %s283, 0
    %s286 = sadd.s32 %s285, 1
    %s287 = scalar_select %p284, %s285, %s286
    %p290 = pneg %p284
    %p291 = scmp.eq.s32.totalorder %s18, 1
    %p292 = por %p290, %p291
    %p293 = scmp.ne.s32.totalorder %s285, %s288
    %p294 = scmp.eq.s32.totalorder %s18, 0
    %p295 = por %p293, %p294
    %p296 = scmp.ne.s32.totalorder %s285, %s288
    %p297 = scmp.eq.s32.totalorder %s23, 1
    %p298 = por %p296, %p297
    %p299 = scmp.ne.s32.totalorder %s288, %s289
    %p300 = scmp.eq.s32.totalorder %s23, 0
    %p301 = por %p299, %p300
    %p302 = scmp.ne.s32.totalorder %s288, %s289
    %p303 = scmp.eq.s32.totalorder %s24, 1
    %p304 = por %p302, %p303
    %p306 = scmp.ne.s32.totalorder %s289, %s305
    %p307 = scmp.eq.s32.totalorder %s24, 0
    %p308 = por %p306, %p307
    %p309 = scmp.le.s32.totalorder 1, %s18
    %p310 = scmp.lt.s32.totalorder %s18, 3
    %p311 = pnand %p309, %p310
    %p312 = pneg %p311
    // Predicated region
    $region9: #{encoder_forward.1} parent=5 // pred_check
      _
    $region10: #{encoder_forward.1} parent=5 // pred_check_branch
      %314 = sbr.rel (%p311) target = $region12
    $region11: #{encoder_forward.1} parent=5 // pred_region
      %s315 = ssub.s32 %s18, 1
      // Predicated region
      $region13: #{encoder_forward.1} parent=11 // pred_check
        %p316 = pneg %p65
      $region14: #{encoder_forward.1} parent=11 // pred_check_branch
        %318 = sbr.rel (%p316) target = $region16
      $region15: #{encoder_forward.1} parent=11 // pred_region
        _
      $region16: #{encoder_forward.1} parent=11 // pred_fallthru
        _
      // Predicated region
      $region17: #{encoder_forward.1} parent=11 // pred_check
        %p319 = pneg %p86
      $region18: #{encoder_forward.1} parent=11 // pred_check_branch
        %321 = sbr.rel (%p319) target = $region20
      $region19: #{encoder_forward.1} parent=11 // pred_region
        _
      $region20: #{encoder_forward.1} parent=11 // pred_fallthru
        _
      // Predicated region
      $region21: #{encoder_forward.1} parent=11 // pred_check
        %p322 = pneg %p107
      $region22: #{encoder_forward.1} parent=11 // pred_check_branch
        %324 = sbr.rel (%p322) target = $region24
      $region23: #{encoder_forward.1} parent=11 // pred_region
        _
      $region24: #{encoder_forward.1} parent=11 // pred_fallthru
        _
      // Predicated region
      $region25: #{encoder_forward.1} parent=11 // pred_check
        %p325 = pneg %p128
      $region26: #{encoder_forward.1} parent=11 // pred_check_branch
        %327 = sbr.rel (%p325) target = $region28
      $region27: #{encoder_forward.1} parent=11 // pred_region
        _
      $region28: #{encoder_forward.1} parent=11 // pred_fallthru
        _
      // Predicated region
      $region29: #{encoder_forward.1} parent=11 // pred_check
        %p328 = pneg %p149
      $region30: #{encoder_forward.1} parent=11 // pred_check_branch
        %330 = sbr.rel (%p328) target = $region32
      $region31: #{encoder_forward.1} parent=11 // pred_region
        _
      $region32: #{encoder_forward.1} parent=11 // pred_fallthru
        _
      // Predicated region
      $region33: #{encoder_forward.1} parent=11 // pred_check
        %p331 = pneg %p170
      $region34: #{encoder_forward.1} parent=11 // pred_check_branch
        %333 = sbr.rel (%p331) target = $region36
      $region35: #{encoder_forward.1} parent=11 // pred_region
        _
      $region36: #{encoder_forward.1} parent=11 // pred_fallthru
        _
      // Predicated region
      $region37: #{encoder_forward.1} parent=11 // pred_check
        %p334 = pneg %p191
      $region38: #{encoder_forward.1} parent=11 // pred_check_branch
        %336 = sbr.rel (%p334) target = $region40
      $region39: #{encoder_forward.1} parent=11 // pred_region
        _
      $region40: #{encoder_forward.1} parent=11 // pred_fallthru
        _
      // Predicated region
      $region41: #{encoder_forward.1} parent=11 // pred_check
        %p337 = pneg %p212
      $region42: #{encoder_forward.1} parent=11 // pred_check_branch
        %339 = sbr.rel (%p337) target = $region44
      $region43: #{encoder_forward.1} parent=11 // pred_region
        _
      $region44: #{encoder_forward.1} parent=11 // pred_fallthru
        _
      // Predicated region
      $region45: #{encoder_forward.1} parent=11 // pred_check
        %p340 = pneg %p233
      $region46: #{encoder_forward.1} parent=11 // pred_check_branch
        %342 = sbr.rel (%p340) target = $region48
      $region47: #{encoder_forward.1} parent=11 // pred_region
        _
      $region48: #{encoder_forward.1} parent=11 // pred_fallthru
        _
      // Predicated region
      $region49: #{encoder_forward.1} parent=11 // pred_check
        %p343 = pneg %p254
      $region50: #{encoder_forward.1} parent=11 // pred_check_branch
        %345 = sbr.rel (%p343) target = $region52
      $region51: #{encoder_forward.1} parent=11 // pred_region
        _
      $region52: #{encoder_forward.1} parent=11 // pred_fallthru
        _
      // Predicated region
      $region53: #{encoder_forward.1} parent=11 // pred_check
        %p346 = pneg %p275
      $region54: #{encoder_forward.1} parent=11 // pred_check_branch
        %348 = sbr.rel (%p346) target = $region56
      $region55: #{encoder_forward.1} parent=11 // pred_region
        _
      $region56: #{encoder_forward.1} parent=11 // pred_fallthru
        _
    $region12: #{encoder_forward.1} parent=5 // pred_fallthru
      _
    %p349 = scmp.lt.s32.totalorder %s18, 2
    // Predicated region
    $region57: #{encoder_forward.1} parent=5 // pred_check
      %p350 = pneg %p349
    $region58: #{encoder_forward.1} parent=5 // pred_check_branch
      %352 = sbr.rel (%p350) target = $region60
    $region59: #{encoder_forward.1} parent=5 // pred_region
      // Predicated region
      $region61: #{encoder_forward.1} parent=59 // pred_check
        %p353 = pneg %p38
      $region62: #{encoder_forward.1} parent=59 // pred_check_branch
        %355 = sbr.rel (%p353) target = $region64
      $region63: #{encoder_forward.1} parent=59 // pred_region
        %p356 = scmp.lt.s32.totalorder %s18, 1
        %s357 = scalar_select %p356, %s18, 1
        %s358 = smul.addr %s357, 2
        %s359 = smul.addr %s358, 8
        %s360 = scalar_lea.vmem %s0, %s359
      $region64: #{encoder_forward.1} parent=59 // pred_fallthru
        _
    $region60: #{encoder_forward.1} parent=5 // pred_fallthru
      _
    %p361 = scmp.le.s32.totalorder 1, %s18
    %p362 = scmp.lt.s32.totalorder %s18, 3
    %p363 = pnand %p361, %p362
    %p364 = pneg %p363
    // Predicated region
    $region65: #{encoder_forward.1} parent=5 // pred_check
      _
    $region66: #{encoder_forward.1} parent=5 // pred_check_branch
      %366 = sbr.rel (%p363) target = $region68
    $region67: #{encoder_forward.1} parent=5 // pred_region
      %s367 = ssub.s32 %s18, 1
      %p368 = scmp.lt.s32.totalorder %s23, 1
      %s369 = scalar_select %p368, %s23, 1
      %s370 = smul.addr %s369, 2
      %s371 = smul.addr %s370, 8
      %s372 = scalar_lea.vmem %s0, %s371
      %p373 = pneg %p44
      %p374 = pneg %p41
      %p375 = pneg %p65
      %p376 = pneg %p62
      %p377 = pneg %p86
      %p378 = pneg %p83
      %p379 = pneg %p107
      %p380 = pneg %p104
      %p381 = pneg %p128
      %p382 = pneg %p125
      %p383 = pneg %p149
      %p384 = pneg %p146
      %p385 = pneg %p170
      %p386 = pneg %p167
      %p387 = pneg %p191
      %p388 = pneg %p188
      %p389 = pneg %p212
      %p390 = pneg %p209
      %p391 = pneg %p233
      %p392 = pneg %p230
      %p393 = pneg %p254
      %p394 = pneg %p251
      %p395 = pneg %p275
      %p396 = pneg %p272
      %p397 = pneg %p301
      %p398 = pneg %p298
      %p399 = scmp.lt.s32.totalorder %s23, 1
      %s400 = scalar_select %p399, %s23, 1
      %s401 = smul.addr %s400, 2
      %s402 = scalar_lea.vmem %s12, %s401
      %p403 = scmp.lt.s32.totalorder %s23, 1
      %s404 = scalar_select %p403, %s23, 1
      %s405 = smul.addr %s404, 2
      %s406 = smul.addr %s405, 8
      %s407 = scalar_lea.vmem %s0, %s406
      %p408 = scmp.lt.s32.totalorder %s23, 1
      %s409 = scalar_select %p408, %s23, 1
      %s410 = smul.addr %s409, 2
      %s411 = scalar_lea.vmem %s12, %s410
      %v413 = vld [vmem:[%s407] sm:$0xff]
      %v414 = vld [vmem:[%s407 + $0x8] sm:$0xff]
      %v415 = vld [vmem:[%s1] sm:$0xff]
      %vm416 = vcmask 130048
      %v418 = vsel %vm416, %v415, 0
      %420 = vmatprep.subr.mxu0 0.0
      %421 = vmatpush1.msra.mxu0 %v413
      %422 = vmatprep.subr.mxu0 0.0
      %423 = vmatpush1.msra.mxu0 %v414
      %424 = vmatprep.subr.mxu0 0.0
      %425 = vmatpush1.msra.mxu0 0.0
      %426 = vmatprep.subr.mxu0 0.0
      %427 = vmatpush1.msra.mxu0 0.0
      %428 = vmatprep.subr.mxu0 0.0
      %429 = vmatpush1.msra.mxu0 0.0
      %430 = vmatprep.subr.mxu0 0.0
      %431 = vmatpush1.msra.mxu0 0.0
      %432 = vmatprep.subr.mxu0 0.0
      %433 = vmatpush1.msra.mxu0 0.0
      %434 = vmatprep.subr.mxu0 0.0
      %435 = vmatpush1.msra.mxu0 0.0
      %436 = vmatprep.subr.mxu0 0.0
      %437 = vmatpush1.msra.mxu0 0.0
      %438 = vmatprep.subr.mxu0 0.0
      %439 = vmatpush1.msra.mxu0 0.0
      %440 = vmatprep.subr.mxu0 0.0
      %441 = vmatpush1.msra.mxu0 0.0
      %442 = vmatprep.subr.mxu0 0.0
      %443 = vmatpush1.msra.mxu0 0.0
      %444 = vmatprep.subr.mxu0 0.0
      %445 = vmatpush1.msra.mxu0 0.0
      %446 = vmatprep.subr.mxu0 0.0
      %447 = vmatpush1.msra.mxu0 0.0
      %448 = vmatprep.subr.mxu0 0.0
      %449 = vmatpush1.msra.mxu0 0.0
      %450 = vmatprep.subr.mxu0 0.0
      %451 = vmatpush1.msra.mxu0 0.0
      %452 = vmatprep.subr.mxu0 0.0
      %453 = vmatpush1.msra.mxu0 0.0
      %454 = vmatprep.subr.mxu0 0.0
      %455 = vmatpush1.msra.mxu0 0.0
      %456 = vmatprep.subr.mxu0 0.0
      %457 = vmatpush1.msra.mxu0 0.0
      %458 = vmatprep.subr.mxu0 0.0
      %459 = vmatpush1.msra.mxu0 0.0
      %460 = vmatprep.subr.mxu0 0.0
      %461 = vmatpush1.msra.mxu0 0.0
      %462 = vmatprep.subr.mxu0 0.0
      %463 = vmatpush1.msra.mxu0 0.0
      %464 = vmatprep.subr.mxu0 0.0
      %465 = vmatpush1.msra.mxu0 0.0
      %466 = vmatprep.subr.mxu0 0.0
      %467 = vmatpush1.msra.mxu0 0.0
      %468 = vmatprep.subr.mxu0 0.0
      %469 = vmatpush1.msra.mxu0 0.0
      %470 = vmatprep.subr.mxu0 0.0
      %471 = vmatpush1.msra.mxu0 0.0
      %472 = vmatprep.subr.mxu0 0.0
      %473 = vmatpush1.msra.mxu0 0.0
      %474 = vmatprep.subr.mxu0 0.0
      %475 = vmatpush1.msra.mxu0 0.0
      %476 = vmatprep.subr.mxu0 0.0
      %477 = vmatpush1.msra.mxu0 0.0
      %478 = vmatprep.subr.mxu0 0.0
      %479 = vmatpush1.msra.mxu0 0.0
      %480 = vmatprep.subr.mxu0 0.0
      %481 = vmatpush1.msra.mxu0 0.0
      %482 = vmatprep.subr.mxu0 0.0
      %483 = vmatpush1.msra.mxu0 0.0
      %484 = vmatprep.mubr.f32.mxu0 0.0
      %485 = vmatmul.mubr.f32.gmra.mrb[0].mxu0 %v418
      %v486 = vpop.f32.mrb[0].mxu0
      %v487 = vadd.f32 0.0, %v486
      %v488 = vpop.f32.mrb[0].mxu0
      %489 = vdwg.mxu0
      %v490 = vpack.c.bf16 %v487, %v487
      %v491 = vld [vmem:[%s2] sm:$0xf]
      %v492 = vld [vmem:[%s2 + $0x4] sm:$0xf]
      %s493 = scalar_lea.vmem %s1, 8
      %v494 = vld [vmem:[%s493] sm:$0xff]
      %v496 = vsel %vm416, %v494, 0
      %498 = vmatprep.subr.mxu0 0.0
      %499 = vmatpush1.msra.mxu0 %v413
      %500 = vmatprep.subr.mxu0 0.0
      %501 = vmatpush1.msra.mxu0 %v414
      %502 = vmatprep.subr.mxu0 0.0
      %503 = vmatpush1.msra.mxu0 0.0
      %504 = vmatprep.subr.mxu0 0.0
      %505 = vmatpush1.msra.mxu0 0.0
      %506 = vmatprep.subr.mxu0 0.0
      %507 = vmatpush1.msra.mxu0 0.0
      %508 = vmatprep.subr.mxu0 0.0
      %509 = vmatpush1.msra.mxu0 0.0
      %510 = vmatprep.subr.mxu0 0.0
      %511 = vmatpush1.msra.mxu0 0.0
      %512 = vmatprep.subr.mxu0 0.0
      %513 = vmatpush1.msra.mxu0 0.0
      %514 = vmatprep.subr.mxu0 0.0
      %515 = vmatpush1.msra.mxu0 0.0
      %516 = vmatprep.subr.mxu0 0.0
      %517 = vmatpush1.msra.mxu0 0.0
      %518 = vmatprep.subr.mxu0 0.0
      %519 = vmatpush1.msra.mxu0 0.0
      %520 = vmatprep.subr.mxu0 0.0
      %521 = vmatpush1.msra.mxu0 0.0
      %522 = vmatprep.subr.mxu0 0.0
      %523 = vmatpush1.msra.mxu0 0.0
      %524 = vmatprep.subr.mxu0 0.0
      %525 = vmatpush1.msra.mxu0 0.0
      %526 = vmatprep.subr.mxu0 0.0
      %527 = vmatpush1.msra.mxu0 0.0
      %528 = vmatprep.subr.mxu0 0.0
      %529 = vmatpush1.msra.mxu0 0.0
      %530 = vmatprep.subr.mxu0 0.0
      %531 = vmatpush1.msra.mxu0 0.0
      %532 = vmatprep.subr.mxu0 0.0
      %533 = vmatpush1.msra.mxu0 0.0
      %534 = vmatprep.subr.mxu0 0.0
      %535 = vmatpush1.msra.mxu0 0.0
      %536 = vmatprep.subr.mxu0 0.0
      %537 = vmatpush1.msra.mxu0 0.0
      %538 = vmatprep.subr.mxu0 0.0
      %539 = vmatpush1.msra.mxu0 0.0
      %540 = vmatprep.subr.mxu0 0.0
      %541 = vmatpush1.msra.mxu0 0.0
      %542 = vmatprep.subr.mxu0 0.0
      %543 = vmatpush1.msra.mxu0 0.0
      %544 = vmatprep.subr.mxu0 0.0
      %545 = vmatpush1.msra.mxu0 0.0
      %546 = vmatprep.subr.mxu0 0.0
      %547 = vmatpush1.msra.mxu0 0.0
      %548 = vmatprep.subr.mxu0 0.0
      %549 = vmatpush1.msra.mxu0 0.0
      %550 = vmatprep.subr.mxu0 0.0
      %551 = vmatpush1.msra.mxu0 0.0
      %552 = vmatprep.subr.mxu0 0.0
      %553 = vmatpush1.msra.mxu0 0.0
      %554 = vmatprep.subr.mxu0 0.0
      %555 = vmatpush1.msra.mxu0 0.0
      %556 = vmatprep.subr.mxu0 0.0
      %557 = vmatpush1.msra.mxu0 0.0
      %558 = vmatprep.subr.mxu0 0.0
      %559 = vmatpush1.msra.mxu0 0.0
      %560 = vmatprep.subr.mxu0 0.0
      %561 = vmatpush1.msra.mxu0 0.0
      %562 = vmatprep.mubr.f32.mxu0 0.0
      %563 = vmatmul.mubr.f32.gmra.mrb[0].mxu0 %v496
      %v564 = vpop.f32.mrb[0].mxu0
      %v565 = vadd.f32 0.0, %v564
      %v566 = vpop.f32.mrb[0].mxu0
      %567 = vdwg.mxu0
      %v568 = vpack.c.bf16 %v565, %v565
      %s569 = scalar_lea.vmem %s2, 8
      %v570 = vld [vmem:[%s569] sm:$0xf]
      %v571 = vld [vmem:[%s569 + $0x4] sm:$0xf]
      %v574 = vunpack.c.l.b16 %v570
      %v575 = vunpack.c.l.b16 %v571
      %v576 = vpack.c.b16 %v575, %v574
      %v579 = vsel %vm416, %v568, 0
      %581 = vmatprep.subr.bf16.mxu0 0
      %582 = vmatpush1.bf16.msra.mxu0 %v576
      %583 = vmatprep.subr.bf16.mxu0 0
      %584 = vmatpush1.bf16.msra.mxu0 0
      %585 = vmatprep.subr.bf16.mxu0 0
      %586 = vmatpush1.bf16.msra.mxu0 0
      %587 = vmatprep.subr.bf16.mxu0 0
      %588 = vmatpush1.bf16.msra.mxu0 0
      %589 = vmatprep.subr.bf16.mxu0 0
      %590 = vmatpush1.bf16.msra.mxu0 0
      %591 = vmatprep.subr.bf16.mxu0 0
      %592 = vmatpush1.bf16.msra.mxu0 0
      %593 = vmatprep.subr.bf16.mxu0 0
      %594 = vmatpush1.bf16.msra.mxu0 0
      %595 = vmatprep.subr.bf16.mxu0 0
      %596 = vmatpush1.bf16.msra.mxu0 0
      %597 = vmatprep.subr.bf16.mxu0 0
      %598 = vmatpush1.bf16.msra.mxu0 0
      %599 = vmatprep.subr.bf16.mxu0 0
      %600 = vmatpush1.bf16.msra.mxu0 0
      %601 = vmatprep.subr.bf16.mxu0 0
      %602 = vmatpush1.bf16.msra.mxu0 0
      %603 = vmatprep.subr.bf16.mxu0 0
      %604 = vmatpush1.bf16.msra.mxu0 0
      %605 = vmatprep.subr.bf16.mxu0 0
      %606 = vmatpush1.bf16.msra.mxu0 0
      %607 = vmatprep.subr.bf16.mxu0 0
      %608 = vmatpush1.bf16.msra.mxu0 0
      %609 = vmatprep.subr.bf16.mxu0 0
      %610 = vmatpush1.bf16.msra.mxu0 0
      %611 = vmatprep.subr.bf16.mxu0 0
      %612 = vmatpush1.bf16.msra.mxu0 0
      %613 = vmatprep.mubr.bf16.mxu0 0
      %614 = vmatmul.mubr.bf16.gmra.mrb[0].mxu0 %v579
      %v615 = vpop.f32.mrb[0].mxu0
      %v616 = vadd.f32 0.0, %v615
      %v617 = vpop.f32.mrb[0].mxu0
      %v618 = vpop.f32.mrb[0].mxu0
      %v619 = vpop.f32.mrb[0].mxu0
      %620 = vdwg.mxu0
      %v623 = vunpack.c.l.b16 %v491
      %v624 = vunpack.c.l.b16 %v492
      %v625 = vpack.c.b16 %v624, %v623
      %v628 = vsel %vm416, %v490, 0
      %630 = vmatprep.subr.bf16.mxu0 0
      %631 = vmatpush1.bf16.msra.mxu0 %v625
      %632 = vmatprep.subr.bf16.mxu0 0
      %633 = vmatpush1.bf16.msra.mxu0 0
      %634 = vmatprep.subr.bf16.mxu0 0
      %635 = vmatpush1.bf16.msra.mxu0 0
      %636 = vmatprep.subr.bf16.mxu0 0
      %637 = vmatpush1.bf16.msra.mxu0 0
      %638 = vmatprep.subr.bf16.mxu0 0
      %639 = vmatpush1.bf16.msra.mxu0 0
      %640 = vmatprep.subr.bf16.mxu0 0
      %641 = vmatpush1.bf16.msra.mxu0 0
      %642 = vmatprep.subr.bf16.mxu0 0
      %643 = vmatpush1.bf16.msra.mxu0 0
      %644 = vmatprep.subr.bf16.mxu0 0
      %645 = vmatpush1.bf16.msra.mxu0 0
      %646 = vmatprep.subr.bf16.mxu0 0
      %647 = vmatpush1.bf16.msra.mxu0 0
      %648 = vmatprep.subr.bf16.mxu0 0
      %649 = vmatpush1.bf16.msra.mxu0 0
      %650 = vmatprep.subr.bf16.mxu0 0
      %651 = vmatpush1.bf16.msra.mxu0 0
      %652 = vmatprep.subr.bf16.mxu0 0
      %653 = vmatpush1.bf16.msra.mxu0 0
      %654 = vmatprep.subr.bf16.mxu0 0
      %655 = vmatpush1.bf16.msra.mxu0 0
      %656 = vmatprep.subr.bf16.mxu0 0
      %657 = vmatpush1.bf16.msra.mxu0 0
      %658 = vmatprep.subr.bf16.mxu0 0
      %659 = vmatpush1.bf16.msra.mxu0 0
      %660 = vmatprep.subr.bf16.mxu0 0
      %661 = vmatpush1.bf16.msra.mxu0 0
      %662 = vmatprep.mubr.bf16.mxu0 0
      %663 = vmatmul.mubr.bf16.gmra.mrb[0].mxu0 %v628
      %v664 = vpop.f32.mrb[0].mxu0
      %v665 = vadd.f32 %v616, %v664
      %v666 = vpop.f32.mrb[0].mxu0
      %v667 = vpop.f32.mrb[0].mxu0
      %v668 = vpop.f32.mrb[0].mxu0
      %669 = vdwg.mxu0
      %s670 = scalar_lea.vmem %s1, 16
      %v671 = vld [vmem:[%s670] sm:$0xff]
      %v673 = vsel %vm416, %v671, 0
      %675 = vmatprep.subr.mxu0 0.0
      %676 = vmatpush1.msra.mxu0 %v413
      %677 = vmatprep.subr.mxu0 0.0
      %678 = vmatpush1.msra.mxu0 %v414
      %679 = vmatprep.subr.mxu0 0.0
      %680 = vmatpush1.msra.mxu0 0.0
      %681 = vmatprep.subr.mxu0 0.0
      %682 = vmatpush1.msra.mxu0 0.0
      %683 = vmatprep.subr.mxu0 0.0
      %684 = vmatpush1.msra.mxu0 0.0
      %685 = vmatprep.subr.mxu0 0.0
      %686 = vmatpush1.msra.mxu0 0.0
      %687 = vmatprep.subr.mxu0 0.0
      %688 = vmatpush1.msra.mxu0 0.0
      %689 = vmatprep.subr.mxu0 0.0
      %690 = vmatpush1.msra.mxu0 0.0
      %691 = vmatprep.subr.mxu0 0.0
      %692 = vmatpush1.msra.mxu0 0.0
      %693 = vmatprep.subr.mxu0 0.0
      %694 = vmatpush1.msra.mxu0 0.0
      %695 = vmatprep.subr.mxu0 0.0
      %696 = vmatpush1.msra.mxu0 0.0
      %697 = vmatprep.subr.mxu0 0.0
      %698 = vmatpush1.msra.mxu0 0.0
      %699 = vmatprep.subr.mxu0 0.0
      %700 = vmatpush1.msra.mxu0 0.0
      %701 = vmatprep.subr.mxu0 0.0
      %702 = vmatpush1.msra.mxu0 0.0
      %703 = vmatprep.subr.mxu0 0.0
      %704 = vmatpush1.msra.mxu0 0.0
      %705 = vmatprep.subr.mxu0 0.0
      %706 = vmatpush1.msra.mxu0 0.0
      %707 = vmatprep.subr.mxu0 0.0
      %708 = vmatpush1.msra.mxu0 0.0
      %709 = vmatprep.subr.mxu0 0.0
      %710 = vmatpush1.msra.mxu0 0.0
      %711 = vmatprep.subr.mxu0 0.0
      %712 = vmatpush1.msra.mxu0 0.0
      %713 = vmatprep.subr.mxu0 0.0
      %714 = vmatpush1.msra.mxu0 0.0
      %715 = vmatprep.subr.mxu0 0.0
      %716 = vmatpush1.msra.mxu0 0.0
      %717 = vmatprep.subr.mxu0 0.0
      %718 = vmatpush1.msra.mxu0 0.0
      %719 = vmatprep.subr.mxu0 0.0
      %720 = vmatpush1.msra.mxu0 0.0
      %721 = vmatprep.subr.mxu0 0.0
      %722 = vmatpush1.msra.mxu0 0.0
      %723 = vmatprep.subr.mxu0 0.0
      %724 = vmatpush1.msra.mxu0 0.0
      %725 = vmatprep.subr.mxu0 0.0
      %726 = vmatpush1.msra.mxu0 0.0
      %727 = vmatprep.subr.mxu0 0.0
      %728 = vmatpush1.msra.mxu0 0.0
      %729 = vmatprep.subr.mxu0 0.0
      %730 = vmatpush1.msra.mxu0 0.0
      %731 = vmatprep.subr.mxu0 0.0
      %732 = vmatpush1.msra.mxu0 0.0
      %733 = vmatprep.subr.mxu0 0.0
      %734 = vmatpush1.msra.mxu0 0.0
      %735 = vmatprep.subr.mxu0 0.0
      %736 = vmatpush1.msra.mxu0 0.0
      %737 = vmatprep.subr.mxu0 0.0
      %738 = vmatpush1.msra.mxu0 0.0
      %739 = vmatprep.mubr.f32.mxu0 0.0
      %740 = vmatmul.mubr.f32.gmra.mrb[0].mxu0 %v673
      %v741 = vpop.f32.mrb[0].mxu0
      %v742 = vadd.f32 0.0, %v741
      %v743 = vpop.f32.mrb[0].mxu0
      %744 = vdwg.mxu0
      %v745 = vpack.c.bf16 %v742, %v742
      %s746 = scalar_lea.vmem %s2, 16
      %v747 = vld [vmem:[%s746] sm:$0xf]
      %v748 = vld [vmem:[%s746 + $0x4] sm:$0xf]
      %v751 = vunpack.c.l.b16 %v747
      %v752 = vunpack.c.l.b16 %v748
      %v753 = vpack.c.b16 %v752, %v751
      %v756 = vsel %vm416, %v745, 0
      %758 = vmatprep.subr.bf16.mxu0 0
      %759 = vmatpush1.bf16.msra.mxu0 %v753
      %760 = vmatprep.subr.bf16.mxu0 0
      %761 = vmatpush1.bf16.msra.mxu0 0
      %762 = vmatprep.subr.bf16.mxu0 0
      %763 = vmatpush1.bf16.msra.mxu0 0
      %764 = vmatprep.subr.bf16.mxu0 0
      %765 = vmatpush1.bf16.msra.mxu0 0
      %766 = vmatprep.subr.bf16.mxu0 0
      %767 = vmatpush1.bf16.msra.mxu0 0
      %768 = vmatprep.subr.bf16.mxu0 0
      %769 = vmatpush1.bf16.msra.mxu0 0
      %770 = vmatprep.subr.bf16.mxu0 0
      %771 = vmatpush1.bf16.msra.mxu0 0
      %772 = vmatprep.subr.bf16.mxu0 0
      %773 = vmatpush1.bf16.msra.mxu0 0
      %774 = vmatprep.subr.bf16.mxu0 0
      %775 = vmatpush1.bf16.msra.mxu0 0
      %776 = vmatprep.subr.bf16.mxu0 0
      %777 = vmatpush1.bf16.msra.mxu0 0
      %778 = vmatprep.subr.bf16.mxu0 0
      %779 = vmatpush1.bf16.msra.mxu0 0
      %780 = vmatprep.subr.bf16.mxu0 0
      %781 = vmatpush1.bf16.msra.mxu0 0
      %782 = vmatprep.subr.bf16.mxu0 0
      %783 = vmatpush1.bf16.msra.mxu0 0
      %784 = vmatprep.subr.bf16.mxu0 0
      %785 = vmatpush1.bf16.msra.mxu0 0
      %786 = vmatprep.subr.bf16.mxu0 0
      %787 = vmatpush1.bf16.msra.mxu0 0
      %788 = vmatprep.subr.bf16.mxu0 0
      %789 = vmatpush1.bf16.msra.mxu0 0
      %790 = vmatprep.mubr.bf16.mxu0 0
      %791 = vmatmul.mubr.bf16.gmra.mrb[0].mxu0 %v756
      %v792 = vpop.f32.mrb[0].mxu0
      %v793 = vadd.f32 0.0, %v792
      %v794 = vpop.f32.mrb[0].mxu0
      %v795 = vpop.f32.mrb[0].mxu0
      %v796 = vpop.f32.mrb[0].mxu0
      %797 = vdwg.mxu0
      %v798 = vadd.f32 %v665, %v793
      %s799 = scalar_lea.vmem %s1, 24
      %v800 = vld [vmem:[%s799] sm:$0xff]
      %v802 = vsel %vm416, %v800, 0
      %804 = vmatprep.subr.mxu0 0.0
      %805 = vmatpush1.msra.mxu0 %v413
      %806 = vmatprep.subr.mxu0 0.0
      %807 = vmatpush1.msra.mxu0 %v414
      %808 = vmatprep.subr.mxu0 0.0
      %809 = vmatpush1.msra.mxu0 0.0
      %810 = vmatprep.subr.mxu0 0.0
      %811 = vmatpush1.msra.mxu0 0.0
      %812 = vmatprep.subr.mxu0 0.0
      %813 = vmatpush1.msra.mxu0 0.0
      %814 = vmatprep.subr.mxu0 0.0
      %815 = vmatpush1.msra.mxu0 0.0
      %816 = vmatprep.subr.mxu0 0.0
      %817 = vmatpush1.msra.mxu0 0.0
      %818 = vmatprep.subr.mxu0 0.0
      %819 = vmatpush1.msra.mxu0 0.0
      %820 = vmatprep.subr.mxu0 0.0
      %821 = vmatpush1.msra.mxu0 0.0
      %822 = vmatprep.subr.mxu0 0.0
      %823 = vmatpush1.msra.mxu0 0.0
      %824 = vmatprep.subr.mxu0 0.0
      %825 = vmatpush1.msra.mxu0 0.0
      %826 = vmatprep.subr.mxu0 0.0
      %827 = vmatpush1.msra.mxu0 0.0
      %828 = vmatprep.subr.mxu0 0.0
      %829 = vmatpush1.msra.mxu0 0.0
      %830 = vmatprep.subr.mxu0 0.0
      %831 = vmatpush1.msra.mxu0 0.0
      %832 = vmatprep.subr.mxu0 0.0
      %833 = vmatpush1.msra.mxu0 0.0
      %834 = vmatprep.subr.mxu0 0.0
      %835 = vmatpush1.msra.mxu0 0.0
      %836 = vmatprep.subr.mxu0 0.0
      %837 = vmatpush1.msra.mxu0 0.0
      %838 = vmatprep.subr.mxu0 0.0
      %839 = vmatpush1.msra.mxu0 0.0
      %840 = vmatprep.subr.mxu0 0.0
      %841 = vmatpush1.msra.mxu0 0.0
      %842 = vmatprep.subr.mxu0 0.0
      %843 = vmatpush1.msra.mxu0 0.0
      %844 = vmatprep.subr.mxu0 0.0
      %845 = vmatpush1.msra.mxu0 0.0
      %846 = vmatprep.subr.mxu0 0.0
      %847 = vmatpush1.msra.mxu0 0.0
      %848 = vmatprep.subr.mxu0 0.0
      %849 = vmatpush1.msra.mxu0 0.0
      %850 = vmatprep.subr.mxu0 0.0
      %851 = vmatpush1.msra.mxu0 0.0
      %852 = vmatprep.subr.mxu0 0.0
      %853 = vmatpush1.msra.mxu0 0.0
      %854 = vmatprep.subr.mxu0 0.0
      %855 = vmatpush1.msra.mxu0 0.0
      %856 = vmatprep.subr.mxu0 0.0
      %857 = vmatpush1.msra.mxu0 0.0
      %858 = vmatprep.subr.mxu0 0.0
      %859 = vmatpush1.msra.mxu0 0.0
      %860 = vmatprep.subr.mxu0 0.0
      %861 = vmatpush1.msra.mxu0 0.0
      %862 = vmatprep.subr.mxu0 0.0
      %863 = vmatpush1.msra.mxu0 0.0
      %864 = vmatprep.subr.mxu0 0.0
      %865 = vmatpush1.msra.mxu0 0.0
      %866 = vmatprep.subr.mxu0 0.0
      %867 = vmatpush1.msra.mxu0 0.0
      %868 = vmatprep.mubr.f32.mxu0 0.0
      %869 = vmatmul.mubr.f32.gmra.mrb[0].mxu0 %v802
      %v870 = vpop.f32.mrb[0].mxu0
      %v871 = vadd.f32 0.0, %v870
      %v872 = vpop.f32.mrb[0].mxu0
      %873 = vdwg.mxu0
      %v874 = vpack.c.bf16 %v871, %v871
      %s875 = scalar_lea.vmem %s2, 24
      %v876 = vld [vmem:[%s875] sm:$0xf]
      %v877 = vld [vmem:[%s875 + $0x4] sm:$0xf]
      %v880 = vunpack.c.l.b16 %v876
      %v881 = vunpack.c.l.b16 %v877
      %v882 = vpack.c.b16 %v881, %v880
      %v885 = vsel %vm416, %v874, 0
      %887 = vmatprep.subr.bf16.mxu0 0
      %888 = vmatpush1.bf16.msra.mxu0 %v882
      %889 = vmatprep.subr.bf16.mxu0 0
      %890 = vmatpush1.bf16.msra.mxu0 0
      %891 = vmatprep.subr.bf16.mxu0 0
      %892 = vmatpush1.bf16.msra.mxu0 0
      %893 = vmatprep.subr.bf16.mxu0 0
      %894 = vmatpush1.bf16.msra.mxu0 0
      %895 = vmatprep.subr.bf16.mxu0 0
      %896 = vmatpush1.bf16.msra.mxu0 0
      %897 = vmatprep.subr.bf16.mxu0 0
      %898 = vmatpush1.bf16.msra.mxu0 0
      %899 = vmatprep.subr.bf16.mxu0 0
      %900 = vmatpush1.bf16.msra.mxu0 0
      %901 = vmatprep.subr.bf16.mxu0 0
      %902 = vmatpush1.bf16.msra.mxu0 0
      %903 = vmatprep.subr.bf16.mxu0 0
      %904 = vmatpush1.bf16.msra.mxu0 0
      %905 = vmatprep.subr.bf16.mxu0 0
      %906 = vmatpush1.bf16.msra.mxu0 0
      %907 = vmatprep.subr.bf16.mxu0 0
      %908 = vmatpush1.bf16.msra.mxu0 0
      %909 = vmatprep.subr.bf16.mxu0 0
      %910 = vmatpush1.bf16.msra.mxu0 0
      %911 = vmatprep.subr.bf16.mxu0 0
      %912 = vmatpush1.bf16.msra.mxu0 0
      %913 = vmatprep.subr.bf16.mxu0 0
      %914 = vmatpush1.bf16.msra.mxu0 0
      %915 = vmatprep.subr.bf16.mxu0 0
      %916 = vmatpush1.bf16.msra.mxu0 0
      %917 = vmatprep.subr.bf16.mxu0 0
      %918 = vmatpush1.bf16.msra.mxu0 0
      %919 = vmatprep.mubr.bf16.mxu0 0
      %920 = vmatmul.mubr.bf16.gmra.mrb[0].mxu0 %v885
      %v921 = vpop.f32.mrb[0].mxu0
      %v922 = vadd.f32 0.0, %v921
      %v923 = vpop.f32.mrb[0].mxu0
      %v924 = vpop.f32.mrb[0].mxu0
      %v925 = vpop.f32.mrb[0].mxu0
      %926 = vdwg.mxu0
      %v927 = vadd.f32 %v798, %v922
      %v928 = vld [vmem:[%s3] sm:$0x1]
      %v930 = vlaneseq
      %v931 = vshrl.u32 %v930, 7
      %v932 = vsub.s32 0, %v931
      %v933 = vrot.slane %v928, %v932
      %v935 = vadd.f32 %v927, %v933
      %v936 = vmax.f32 %v935, 0.0
      %v937 = vld [vmem:[%s4] sm:$0xf]
      %vm938 = vcmask 64512
      %v940 = vsel %vm938, %v937, 0
      %942 = vmatprep.subr.mxu0 0.0
      %943 = vmatpush1.msra.mxu0 %v936
      %944 = vmatprep.subr.mxu0 0.0
      %945 = vmatpush1.msra.mxu0 0.0
      %946 = vmatprep.subr.mxu0 0.0
      %947 = vmatpush1.msra.mxu0 0.0
      %948 = vmatprep.subr.mxu0 0.0
      %949 = vmatpush1.msra.mxu0 0.0
      %950 = vmatprep.subr.mxu0 0.0
      %951 = vmatpush1.msra.mxu0 0.0
      %952 = vmatprep.subr.mxu0 0.0
      %953 = vmatpush1.msra.mxu0 0.0
      %954 = vmatprep.subr.mxu0 0.0
      %955 = vmatpush1.msra.mxu0 0.0
      %956 = vmatprep.subr.mxu0 0.0
      %957 = vmatpush1.msra.mxu0 0.0
      %958 = vmatprep.subr.mxu0 0.0
      %959 = vmatpush1.msra.mxu0 0.0
      %960 = vmatprep.subr.mxu0 0.0
      %961 = vmatpush1.msra.mxu0 0.0
      %962 = vmatprep.subr.mxu0 0.0
      %963 = vmatpush1.msra.mxu0 0.0
      %964 = vmatprep.subr.mxu0 0.0
      %965 = vmatpush1.msra.mxu0 0.0
      %966 = vmatprep.subr.mxu0 0.0
      %967 = vmatpush1.msra.mxu0 0.0
      %968 = vmatprep.subr.mxu0 0.0
      %969 = vmatpush1.msra.mxu0 0.0
      %970 = vmatprep.subr.mxu0 0.0
      %971 = vmatpush1.msra.mxu0 0.0
      %972 = vmatprep.subr.mxu0 0.0
      %973 = vmatpush1.msra.mxu0 0.0
      %974 = vmatprep.subr.mxu0 0.0
      %975 = vmatpush1.msra.mxu0 0.0
      %976 = vmatprep.subr.mxu0 0.0
      %977 = vmatpush1.msra.mxu0 0.0
      %978 = vmatprep.subr.mxu0 0.0
      %979 = vmatpush1.msra.mxu0 0.0
      %980 = vmatprep.subr.mxu0 0.0
      %981 = vmatpush1.msra.mxu0 0.0
      %982 = vmatprep.subr.mxu0 0.0
      %983 = vmatpush1.msra.mxu0 0.0
      %984 = vmatprep.subr.mxu0 0.0
      %985 = vmatpush1.msra.mxu0 0.0
      %986 = vmatprep.subr.mxu0 0.0
      %987 = vmatpush1.msra.mxu0 0.0
      %988 = vmatprep.subr.mxu0 0.0
      %989 = vmatpush1.msra.mxu0 0.0
      %990 = vmatprep.subr.mxu0 0.0
      %991 = vmatpush1.msra.mxu0 0.0
      %992 = vmatprep.subr.mxu0 0.0
      %993 = vmatpush1.msra.mxu0 0.0
      %994 = vmatprep.subr.mxu0 0.0
      %995 = vmatpush1.msra.mxu0 0.0
      %996 = vmatprep.subr.mxu0 0.0
      %997 = vmatpush1.msra.mxu0 0.0
      %998 = vmatprep.subr.mxu0 0.0
      %999 = vmatpush1.msra.mxu0 0.0
      %1000 = vmatprep.subr.mxu0 0.0
      %1001 = vmatpush1.msra.mxu0 0.0
      %1002 = vmatprep.subr.mxu0 0.0
      %1003 = vmatpush1.msra.mxu0 0.0
      %1004 = vmatprep.subr.mxu0 0.0
      %1005 = vmatpush1.msra.mxu0 0.0
      %1006 = vmatprep.mubr.f32.mxu0 0.0
      %1007 = vmatmul.mubr.f32.gmra.mrb[0].mxu0 %v940
      %v1008 = vpop.f32.mrb[0].mxu0
      %v1009 = vadd.f32 0.0, %v1008
      %v1010 = vpop.f32.mrb[0].mxu0
      %1011 = vdwg.mxu0
      %v1012 = vpack.c.bf16 %v1009, %v1009
      %v1013 = vld [vmem:[%s5] sm:$0xf]
      %v1014 = vld [vmem:[%s5 + $0x4] sm:$0xf]
      %v1015 = vld [vmem:[%s5 + $0x8] sm:$0xf]
      %v1016 = vld [vmem:[%s5 + $0xc] sm:$0xf]
      %v1017 = vld [vmem:[%s5 + $0x10] sm:$0xf]
      %v1018 = vld [vmem:[%s5 + $0x14] sm:$0xf]
      %v1019 = vld [vmem:[%s5 + $0x18] sm:$0xf]
      %v1020 = vld [vmem:[%s5 + $0x1c] sm:$0xf]
      %v1021 = vld [vmem:[%s5 + $0x20] sm:$0xf]
      %v1022 = vld [vmem:[%s5 + $0x24] sm:$0xf]
      %v1023 = vld [vmem:[%s5 + $0x28] sm:$0xf]
      %v1024 = vld [vmem:[%s5 + $0x2c] sm:$0xf]
      %v1025 = vld [vmem:[%s5 + $0x30] sm:$0xf]
      %v1026 = vld [vmem:[%s5 + $0x34] sm:$0xf]
      %v1027 = vld [vmem:[%s5 + $0x38] sm:$0xf]
      %v1028 = vld [vmem:[%s5 + $0x3c] sm:$0xf]
      %s1029 = scalar_lea.vmem %s4, 4
      %v1030 = vld [vmem:[%s1029] sm:$0xf]
      %v1032 = vsel %vm938, %v1030, 0
      %1034 = vmatprep.subr.mxu0 0.0
      %1035 = vmatpush1.msra.mxu0 %v936
      %1036 = vmatprep.subr.mxu0 0.0
      %1037 = vmatpush1.msra.mxu0 0.0
      %1038 = vmatprep.subr.mxu0 0.0
      %1039 = vmatpush1.msra.mxu0 0.0
      %1040 = vmatprep.subr.mxu0 0.0
      %1041 = vmatpush1.msra.mxu0 0.0
      %1042 = vmatprep.subr.mxu0 0.0
      %1043 = vmatpush1.msra.mxu0 0.0
      %1044 = vmatprep.subr.mxu0 0.0
      %1045 = vmatpush1.msra.mxu0 0.0
      %1046 = vmatprep.subr.mxu0 0.0
      %1047 = vmatpush1.msra.mxu0 0.0
      %1048 = vmatprep.subr.mxu0 0.0
      %1049 = vmatpush1.msra.mxu0 0.0
      %1050 = vmatprep.subr.mxu0 0.0
      %1051 = vmatpush1.msra.mxu0 0.0
      %1052 = vmatprep.subr.mxu0 0.0
      %1053 = vmatpush1.msra.mxu0 0.0
      %1054 = vmatprep.subr.mxu0 0.0
      %1055 = vmatpush1.msra.mxu0 0.0
      %1056 = vmatprep.subr.mxu0 0.0
      %1057 = vmatpush1.msra.mxu0 0.0
      %1058 = vmatprep.subr.mxu0 0.0
      %1059 = vmatpush1.msra.mxu0 0.0
      %1060 = vmatprep.subr.mxu0 0.0
      %1061 = vmatpush1.msra.mxu0 0.0
      %1062 = vmatprep.subr.mxu0 0.0
      %1063 = vmatpush1.msra.mxu0 0.0
      %1064 = vmatprep.subr.mxu0 0.0
      %1065 = vmatpush1.msra.mxu0 0.0
      %1066 = vmatprep.subr.mxu0 0.0
      %1067 = vmatpush1.msra.mxu0 0.0
      %1068 = vmatprep.subr.mxu0 0.0
      %1069 = vmatpush1.msra.mxu0 0.0
      %1070 = vmatprep.subr.mxu0 0.0
      %1071 = vmatpush1.msra.mxu0 0.0
      %1072 = vmatprep.subr.mxu0 0.0
      %1073 = vmatpush1.msra.mxu0 0.0
      %1074 = vmatprep.subr.mxu0 0.0
      %1075 = vmatpush1.msra.mxu0 0.0
      %1076 = vmatprep.subr.mxu0 0.0
      %1077 = vmatpush1.msra.mxu0 0.0
      %1078 = vmatprep.subr.mxu0 0.0
      %1079 = vmatpush1.msra.mxu0 0.0
      %1080 = vmatprep.subr.mxu0 0.0
      %1081 = vmatpush1.msra.mxu0 0.0
      %1082 = vmatprep.subr.mxu0 0.0
      %1083 = vmatpush1.msra.mxu0 0.0
      %1084 = vmatprep.subr.mxu0 0.0
      %1085 = vmatpush1.msra.mxu0 0.0
      %1086 = vmatprep.subr.mxu0 0.0
      %1087 = vmatpush1.msra.mxu0 0.0
      %1088 = vmatprep.subr.mxu0 0.0
      %1089 = vmatpush1.msra.mxu0 0.0
      %1090 = vmatprep.subr.mxu0 0.0
      %1091 = vmatpush1.msra.mxu0 0.0
      %1092 = vmatprep.subr.mxu0 0.0
      %1093 = vmatpush1.msra.mxu0 0.0
      %1094 = vmatprep.subr.mxu0 0.0
      %1095 = vmatpush1.msra.mxu0 0.0
      %1096 = vmatprep.subr.mxu0 0.0
      %1097 = vmatpush1.msra.mxu0 0.0
      %1098 = vmatprep.mubr.f32.mxu0 0.0
      %1099 = vmatmul.mubr.f32.gmra.mrb[0].mxu0 %v1032
      %v1100 = vpop.f32.mrb[0].mxu0
      %v1101 = vadd.f32 0.0, %v1100
      %v1102 = vpop.f32.mrb[0].mxu0
      %1103 = vdwg.mxu0
      %v1104 = vpack.c.bf16 %v1101, %v1101
      %s1105 = scalar_lea.vmem %s5, 64
      %v1106 = vld [vmem:[%s1105] sm:$0xf]
      %v1107 = vld [vmem:[%s1105 + $0x4] sm:$0xf]
      %v1108 = vld [vmem:[%s1105 + $0x8] sm:$0xf]
      %v1109 = vld [vmem:[%s1105 + $0xc] sm:$0xf]
      %v1110 = vld [vmem:[%s1105 + $0x10] sm:$0xf]
      %v1111 = vld [vmem:[%s1105 + $0x14] sm:$0xf]
      %v1112 = vld [vmem:[%s1105 + $0x18] sm:$0xf]
      %v1113 = vld [vmem:[%s1105 + $0x1c] sm:$0xf]
      %v1114 = vld [vmem:[%s1105 + $0x20] sm:$0xf]
      %v1115 = vld [vmem:[%s1105 + $0x24] sm:$0xf]
      %v1116 = vld [vmem:[%s1105 + $0x28] sm:$0xf]
      %v1117 = vld [vmem:[%s1105 + $0x2c] sm:$0xf]
      %v1118 = vld [vmem:[%s1105 + $0x30] sm:$0xf]
      %v1119 = vld [vmem:[%s1105 + $0x34] sm:$0xf]
      %v1120 = vld [vmem:[%s1105 + $0x38] sm:$0xf]
      %v1121 = vld [vmem:[%s1105 + $0x3c] sm:$0xf]
      %v1138 = vunpack.c.l.b16 %v1106
      %v1139 = vunpack.c.l.b16 %v1107
      %v1140 = vunpack.c.l.b16 %v1108
      %v1141 = vunpack.c.l.b16 %v1109
      %v1142 = vunpack.c.l.b16 %v1110
      %v1143 = vunpack.c.l.b16 %v1111
      %v1144 = vunpack.c.l.b16 %v1112
      %v1145 = vunpack.c.l.b16 %v1113
      %v1146 = vunpack.c.l.b16 %v1114
      %v1147 = vunpack.c.l.b16 %v1115
      %v1148 = vunpack.c.l.b16 %v1116
      %v1149 = vunpack.c.l.b16 %v1117
      %v1150 = vunpack.c.l.b16 %v1118
      %v1151 = vunpack.c.l.b16 %v1119
      %v1152 = vunpack.c.l.b16 %v1120
      %v1153 = vunpack.c.l.b16 %v1121
      %v1154 = vpack.c.b16 %v1139, %v1138
      %v1155 = vpack.c.b16 %v1141, %v1140
      %v1156 = vpack.c.b16 %v1143, %v1142
      %v1157 = vpack.c.b16 %v1145, %v1144
      %v1158 = vpack.c.b16 %v1147, %v1146
      %v1159 = vpack.c.b16 %v1149, %v1148
      %v1160 = vpack.c.b16 %v1151, %v1150
      %v1161 = vpack.c.b16 %v1153, %v1152
      %1170 = vmatprep.subr.bf16.mxu0 0
      %1171 = vmatpush1.bf16.msra.mxu0 %v1154
      %1172 = vmatprep.subr.bf16.mxu0 0
      %1173 = vmatpush1.bf16.msra.mxu0 %v1155
      %1174 = vmatprep.subr.bf16.mxu0 0
      %1175 = vmatpush1.bf16.msra.mxu0 %v1156
      %1176 = vmatprep.subr.bf16.mxu0 0
      %1177 = vmatpush1.bf16.msra.mxu0 %v1157
      %1178 = vmatprep.subr.bf16.mxu0 0
      %1179 = vmatpush1.bf16.msra.mxu0 %v1158
      %1180 = vmatprep.subr.bf16.mxu0 0
      %1181 = vmatpush1.bf16.msra.mxu0 %v1159
      %1182 = vmatprep.subr.bf16.mxu0 0
      %1183 = vmatpush1.bf16.msra.mxu0 %v1160
      %1184 = vmatprep.subr.bf16.mxu0 0
      %1185 = vmatpush1.bf16.msra.mxu0 %v1161
      %1186 = vmatprep.subr.bf16.mxu0 0
      %1187 = vmatpush1.bf16.msra.mxu0 0
      %1188 = vmatprep.subr.bf16.mxu0 0
      %1189 = vmatpush1.bf16.msra.mxu0 0
      %1190 = vmatprep.subr.bf16.mxu0 0
      %1191 = vmatpush1.bf16.msra.mxu0 0
      %1192 = vmatprep.subr.bf16.mxu0 0
      %1193 = vmatpush1.bf16.msra.mxu0 0
      %1194 = vmatprep.subr.bf16.mxu0 0
      %1195 = vmatpush1.bf16.msra.mxu0 0
      %1196 = vmatprep.subr.bf16.mxu0 0
      %1197 = vmatpush1.bf16.msra.mxu0 0
      %1198 = vmatprep.subr.bf16.mxu0 0
      %1199 = vmatpush1.bf16.msra.mxu0 0
      %1200 = vmatprep.subr.bf16.mxu0 0
      %1201 = vmatpush1.bf16.msra.mxu0 0
      %1202 = vmatprep.mubr.bf16.mxu0 0
      %1203 = vmatmul.mubr.bf16.gmra.mrb[0].mxu0 %v1104
      %v1204 = vpop.f32.mrb[0].mxu0
      %v1205 = vadd.f32 0.0, %v1204
      %v1206 = vpop.f32.mrb[0].mxu0
      %v1207 = vpop.f32.mrb[0].mxu0
      %v1208 = vpop.f32.mrb[0].mxu0
      %1209 = vdwg.mxu0
      %v1226 = vunpack.c.l.b16 %v1013
      %v1227 = vunpack.c.l.b16 %v1014
      %v1228 = vunpack.c.l.b16 %v1015
      %v1229 = vunpack.c.l.b16 %v1016
      %v1230 = vunpack.c.l.b16 %v1017
      %v1231 = vunpack.c.l.b16 %v1018
      %v1232 = vunpack.c.l.b16 %v1019
      %v1233 = vunpack.c.l.b16 %v1020
      %v1234 = vunpack.c.l.b16 %v1021
      %v1235 = vunpack.c.l.b16 %v1022
      %v1236 = vunpack.c.l.b16 %v1023
      %v1237 = vunpack.c.l.b16 %v1024
      %v1238 = vunpack.c.l.b16 %v1025
      %v1239 = vunpack.c.l.b16 %v1026
      %v1240 = vunpack.c.l.b16 %v1027
      %v1241 = vunpack.c.l.b16 %v1028
      %v1242 = vpack.c.b16 %v1227, %v1226
      %v1243 = vpack.c.b16 %v1229, %v1228
      %v1244 = vpack.c.b16 %v1231, %v1230
      %v1245 = vpack.c.b16 %v1233, %v1232
      %v1246 = vpack.c.b16 %v1235, %v1234
      %v1247 = vpack.c.b16 %v1237, %v1236
      %v1248 = vpack.c.b16 %v1239, %v1238
      %v1249 = vpack.c.b16 %v1241, %v1240
      %1258 = vmatprep.subr.bf16.mxu0 0
      %1259 = vmatpush1.bf16.msra.mxu0 %v1242
      %1260 = vmatprep.subr.bf16.mxu0 0
      %1261 = vmatpush1.bf16.msra.mxu0 %v1243
      %1262 = vmatprep.subr.bf16.mxu0 0
      %1263 = vmatpush1.bf16.msra.mxu0 %v1244
      %1264 = vmatprep.subr.bf16.mxu0 0
      %1265 = vmatpush1.bf16.msra.mxu0 %v1245
      %1266 = vmatprep.subr.bf16.mxu0 0
      %1267 = vmatpush1.bf16.msra.mxu0 %v1246
      %1268 = vmatprep.subr.bf16.mxu0 0
      %1269 = vmatpush1.bf16.msra.mxu0 %v1247
      %1270 = vmatprep.subr.bf16.mxu0 0
      %1271 = vmatpush1.bf16.msra.mxu0 %v1248
      %1272 = vmatprep.subr.bf16.mxu0 0
      %1273 = vmatpush1.bf16.msra.mxu0 %v1249
      %1274 = vmatprep.subr.bf16.mxu0 0
      %1275 = vmatpush1.bf16.msra.mxu0 0
      %1276 = vmatprep.subr.bf16.mxu0 0
      %1277 = vmatpush1.bf16.msra.mxu0 0
      %1278 = vmatprep.subr.bf16.mxu0 0
      %1279 = vmatpush1.bf16.msra.mxu0 0
      %1280 = vmatprep.subr.bf16.mxu0 0
      %1281 = vmatpush1.bf16.msra.mxu0 0
      %1282 = vmatprep.subr.bf16.mxu0 0
      %1283 = vmatpush1.bf16.msra.mxu0 0
      %1284 = vmatprep.subr.bf16.mxu0 0
      %1285 = vmatpush1.bf16.msra.mxu0 0
      %1286 = vmatprep.subr.bf16.mxu0 0
      %1287 = vmatpush1.bf16.msra.mxu0 0
      %1288 = vmatprep.subr.bf16.mxu0 0
      %1289 = vmatpush1.bf16.msra.mxu0 0
      %1290 = vmatprep.mubr.bf16.mxu0 0
      %1291 = vmatmul.mubr.bf16.gmra.mrb[0].mxu0 %v1012
      %v1292 = vpop.f32.mrb[0].mxu0
      %v1293 = vadd.f32 %v1205, %v1292
      %v1294 = vpop.f32.mrb[0].mxu0
      %v1295 = vpop.f32.mrb[0].mxu0
      %v1296 = vpop.f32.mrb[0].mxu0
      %1297 = vdwg.mxu0
      %s1298 = scalar_lea.vmem %s4, 8
      %v1299 = vld [vmem:[%s1298] sm:$0xf]
      %v1301 = vsel %vm938, %v1299, 0
      %1303 = vmatprep.subr.mxu0 0.0
      %1304 = vmatpush1.msra.mxu0 %v936
      %1305 = vmatprep.subr.mxu0 0.0
      %1306 = vmatpush1.msra.mxu0 0.0
      %1307 = vmatprep.subr.mxu0 0.0
      %1308 = vmatpush1.msra.mxu0 0.0
      %1309 = vmatprep.subr.mxu0 0.0
      %1310 = vmatpush1.msra.mxu0 0.0
      %1311 = vmatprep.subr.mxu0 0.0
      %1312 = vmatpush1.msra.mxu0 0.0
      %1313 = vmatprep.subr.mxu0 0.0
      %1314 = vmatpush1.msra.mxu0 0.0
      %1315 = vmatprep.subr.mxu0 0.0
      %1316 = vmatpush1.msra.mxu0 0.0
      %1317 = vmatprep.subr.mxu0 0.0
      %1318 = vmatpush1.msra.mxu0 0.0
      %1319 = vmatprep.subr.mxu0 0.0
      %1320 = vmatpush1.msra.mxu0 0.0
      %1321 = vmatprep.subr.mxu0 0.0
      %1322 = vmatpush1.msra.mxu0 0.0
      %1323 = vmatprep.subr.mxu0 0.0
      %1324 = vmatpush1.msra.mxu0 0.0
      %1325 = vmatprep.subr.mxu0 0.0
      %1326 = vmatpush1.msra.mxu0 0.0
      %1327 = vmatprep.subr.mxu0 0.0
      %1328 = vmatpush1.msra.mxu0 0.0
      %1329 = vmatprep.subr.mxu0 0.0
      %1330 = vmatpush1.msra.mxu0 0.0
      %1331 = vmatprep.subr.mxu0 0.0
      %1332 = vmatpush1.msra.mxu0 0.0
      %1333 = vmatprep.subr.mxu0 0.0
      %1334 = vmatpush1.msra.mxu0 0.0
      %1335 = vmatprep.subr.mxu0 0.0
      %1336 = vmatpush1.msra.mxu0 0.0
      %1337 = vmatprep.subr.mxu0 0.0
      %1338 = vmatpush1.msra.mxu0 0.0
      %1339 = vmatprep.subr.mxu0 0.0
      %1340 = vmatpush1.msra.mxu0 0.0
      %1341 = vmatprep.subr.mxu0 0.0
      %1342 = vmatpush1.msra.mxu0 0.0
      %1343 = vmatprep.subr.mxu0 0.0
      %1344 = vmatpush1.msra.mxu0 0.0
      %1345 = vmatprep.subr.mxu0 0.0
      %1346 = vmatpush1.msra.mxu0 0.0
      %1347 = vmatprep.subr.mxu0 0.0
      %1348 = vmatpush1.msra.mxu0 0.0
      %1349 = vmatprep.subr.mxu0 0.0
      %1350 = vmatpush1.msra.mxu0 0.0
      %1351 = vmatprep.subr.mxu0 0.0
      %1352 = vmatpush1.msra.mxu0 0.0
      %1353 = vmatprep.subr.mxu0 0.0
      %1354 = vmatpush1.msra.mxu0 0.0
      %1355 = vmatprep.subr.mxu0 0.0
      %1356 = vmatpush1.msra.mxu0 0.0
      %1357 = vmatprep.subr.mxu0 0.0
      %1358 = vmatpush1.msra.mxu0 0.0
      %1359 = vmatprep.subr.mxu0 0.0
      %1360 = vmatpush1.msra.mxu0 0.0
      %1361 = vmatprep.subr.mxu0 0.0
      %1362 = vmatpush1.msra.mxu0 0.0
      %1363 = vmatprep.subr.mxu0 0.0
      %1364 = vmatpush1.msra.mxu0 0.0
      %1365 = vmatprep.subr.mxu0 0.0
      %1366 = vmatpush1.msra.mxu0 0.0
      %1367 = vmatprep.mubr.f32.mxu0 0.0
      %1368 = vmatmul.mubr.f32.gmra.mrb[0].mxu0 %v1301
      %v1369 = vpop.f32.mrb[0].mxu0
      %v1370 = vadd.f32 0.0, %v1369
      %v1371 = vpop.f32.mrb[0].mxu0
      %1372 = vdwg.mxu0
      %v1373 = vpack.c.bf16 %v1370, %v1370
      %s1374 = scalar_lea.vmem %s5, 128
      %v1375 = vld [vmem:[%s1374] sm:$0xf]
      %v1376 = vld [vmem:[%s1374 + $0x4] sm:$0xf]
      %v1377 = vld [vmem:[%s1374 + $0x8] sm:$0xf]
      %v1378 = vld [vmem:[%s1374 + $0xc] sm:$0xf]
      %v1379 = vld [vmem:[%s1374 + $0x10] sm:$0xf]
      %v1380 = vld [vmem:[%s1374 + $0x14] sm:$0xf]
      %v1381 = vld [vmem:[%s1374 + $0x18] sm:$0xf]
      %v1382 = vld [vmem:[%s1374 + $0x1c] sm:$0xf]
      %v1383 = vld [vmem:[%s1374 + $0x20] sm:$0xf]
      %v1384 = vld [vmem:[%s1374 + $0x24] sm:$0xf]
      %v1385 = vld [vmem:[%s1374 + $0x28] sm:$0xf]
      %v1386 = vld [vmem:[%s1374 + $0x2c] sm:$0xf]
      %v1387 = vld [vmem:[%s1374 + $0x30] sm:$0xf]
      %v1388 = vld [vmem:[%s1374 + $0x34] sm:$0xf]
      %v1389 = vld [vmem:[%s1374 + $0x38] sm:$0xf]
      %v1390 = vld [vmem:[%s1374 + $0x3c] sm:$0xf]
      %v1407 = vunpack.c.l.b16 %v1375
      %v1408 = vunpack.c.l.b16 %v1376
      %v1409 = vunpack.c.l.b16 %v1377
      %v1410 = vunpack.c.l.b16 %v1378
      %v1411 = vunpack.c.l.b16 %v1379
      %v1412 = vunpack.c.l.b16 %v1380
      %v1413 = vunpack.c.l.b16 %v1381
      %v1414 = vunpack.c.l.b16 %v1382
      %v1415 = vunpack.c.l.b16 %v1383
      %v1416 = vunpack.c.l.b16 %v1384
      %v1417 = vunpack.c.l.b16 %v1385
      %v1418 = vunpack.c.l.b16 %v1386
      %v1419 = vunpack.c.l.b16 %v1387
      %v1420 = vunpack.c.l.b16 %v1388
      %v1421 = vunpack.c.l.b16 %v1389
      %v1422 = vunpack.c.l.b16 %v1390
      %v1423 = vpack.c.b16 %v1408, %v1407
      %v1424 = vpack.c.b16 %v1410, %v1409
      %v1425 = vpack.c.b16 %v1412, %v1411
      %v1426 = vpack.c.b16 %v1414, %v1413
      %v1427 = vpack.c.b16 %v1416, %v1415
      %v1428 = vpack.c.b16 %v1418, %v1417
      %v1429 = vpack.c.b16 %v1420, %v1419
      %v1430 = vpack.c.b16 %v1422, %v1421
      %1439 = vmatprep.subr.bf16.mxu0 0
      %1440 = vmatpush1.bf16.msra.mxu0 %v1423
      %1441 = vmatprep.subr.bf16.mxu0 0
      %1442 = vmatpush1.bf16.msra.mxu0 %v1424
      %1443 = vmatprep.subr.bf16.mxu0 0
      %1444 = vmatpush1.bf16.msra.mxu0 %v1425
      %1445 = vmatprep.subr.bf16.mxu0 0
      %1446 = vmatpush1.bf16.msra.mxu0 %v1426
      %1447 = vmatprep.subr.bf16.mxu0 0
      %1448 = vmatpush1.bf16.msra.mxu0 %v1427
      %1449 = vmatprep.subr.bf16.mxu0 0
      %1450 = vmatpush1.bf16.msra.mxu0 %v1428
      %1451 = vmatprep.subr.bf16.mxu0 0
      %1452 = vmatpush1.bf16.msra.mxu0 %v1429
      %1453 = vmatprep.subr.bf16.mxu0 0
      %1454 = vmatpush1.bf16.msra.mxu0 %v1430
      %1455 = vmatprep.subr.bf16.mxu0 0
      %1456 = vmatpush1.bf16.msra.mxu0 0
      %1457 = vmatprep.subr.bf16.mxu0 0
      %1458 = vmatpush1.bf16.msra.mxu0 0
      %1459 = vmatprep.subr.bf16.mxu0 0
      %1460 = vmatpush1.bf16.msra.mxu0 0
      %1461 = vmatprep.subr.bf16.mxu0 0
      %1462 = vmatpush1.bf16.msra.mxu0 0
      %1463 = vmatprep.subr.bf16.mxu0 0
      %1464 = vmatpush1.bf16.msra.mxu0 0
      %1465 = vmatprep.subr.bf16.mxu0 0
      %1466 = vmatpush1.bf16.msra.mxu0 0
      %1467 = vmatprep.subr.bf16.mxu0 0
      %1468 = vmatpush1.bf16.msra.mxu0 0
      %1469 = vmatprep.subr.bf16.mxu0 0
      %1470 = vmatpush1.bf16.msra.mxu0 0
      %1471 = vmatprep.mubr.bf16.mxu0 0
      %1472 = vmatmul.mubr.bf16.gmra.mrb[0].mxu0 %v1373
      %v1473 = vpop.f32.mrb[0].mxu0
      %v1474 = vadd.f32 0.0, %v1473
      %v1475 = vpop.f32.mrb[0].mxu0
      %v1476 = vpop.f32.mrb[0].mxu0
      %v1477 = vpop.f32.mrb[0].mxu0
      %1478 = vdwg.mxu0
      %v1479 = vadd.f32 %v1293, %v1474
      %s1480 = scalar_lea.vmem %s4, 12
      %v1481 = vld [vmem:[%s1480] sm:$0xf]
      %v1483 = vsel %vm938, %v1481, 0
      %1485 = vmatprep.subr.mxu0 0.0
      %1486 = vmatpush1.msra.mxu0 %v936
      %1487 = vmatprep.subr.mxu0 0.0
      %1488 = vmatpush1.msra.mxu0 0.0
      %1489 = vmatprep.subr.mxu0 0.0
      %1490 = vmatpush1.msra.mxu0 0.0
      %1491 = vmatprep.subr.mxu0 0.0
      %1492 = vmatpush1.msra.mxu0 0.0
      %1493 = vmatprep.subr.mxu0 0.0
      %1494 = vmatpush1.msra.mxu0 0.0
      %1495 = vmatprep.subr.mxu0 0.0
      %1496 = vmatpush1.msra.mxu0 0.0
      %1497 = vmatprep.subr.mxu0 0.0
      %1498 = vmatpush1.msra.mxu0 0.0
      %1499 = vmatprep.subr.mxu0 0.0
      %1500 = vmatpush1.msra.mxu0 0.0
      %1501 = vmatprep.subr.mxu0 0.0
      %1502 = vmatpush1.msra.mxu0 0.0
      %1503 = vmatprep.subr.mxu0 0.0
      %1504 = vmatpush1.msra.mxu0 0.0
      %1505 = vmatprep.subr.mxu0 0.0
      %1506 = vmatpush1.msra.mxu0 0.0
      %1507 = vmatprep.subr.mxu0 0.0
      %1508 = vmatpush1.msra.mxu0 0.0
      %1509 = vmatprep.subr.mxu0 0.0
      %1510 = vmatpush1.msra.mxu0 0.0
      %1511 = vmatprep.subr.mxu0 0.0
      %1512 = vmatpush1.msra.mxu0 0.0
      %1513 = vmatprep.subr.mxu0 0.0
      %1514 = vmatpush1.msra.mxu0 0.0
      %1515 = vmatprep.subr.mxu0 0.0
      %1516 = vmatpush1.msra.mxu0 0.0
      %1517 = vmatprep.subr.mxu0 0.0
      %1518 = vmatpush1.msra.mxu0 0.0
      %1519 = vmatprep.subr.mxu0 0.0
      %1520 = vmatpush1.msra.mxu0 0.0
      %1521 = vmatprep.subr.mxu0 0.0
      %1522 = vmatpush1.msra.mxu0 0.0
      %1523 = vmatprep.subr.mxu0 0.0
      %1524 = vmatpush1.msra.mxu0 0.0
      %1525 = vmatprep.subr.mxu0 0.0
      %1526 = vmatpush1.msra.mxu0 0.0
      %1527 = vmatprep.subr.mxu0 0.0
      %1528 = vmatpush1.msra.mxu0 0.0
      %1529 = vmatprep.subr.mxu0 0.0
      %1530 = vmatpush1.msra.mxu0 0.0
      %1531 = vmatprep.subr.mxu0 0.0
      %1532 = vmatpush1.msra.mxu0 0.0
      %1533 = vmatprep.subr.mxu0 0.0
      %1534 = vmatpush1.msra.mxu0 0.0
      %1535 = vmatprep.subr.mxu0 0.0
      %1536 = vmatpush1.msra.mxu0 0.0
      %1537 = vmatprep.subr.mxu0 0.0
      %1538 = vmatpush1.msra.mxu0 0.0
      %1539 = vmatprep.subr.mxu0 0.0
      %1540 = vmatpush1.msra.mxu0 0.0
      %1541 = vmatprep.subr.mxu0 0.0
      %1542 = vmatpush1.msra.mxu0 0.0
      %1543 = vmatprep.subr.mxu0 0.0
      %1544 = vmatpush1.msra.mxu0 0.0
      %1545 = vmatprep.subr.mxu0 0.0
      %1546 = vmatpush1.msra.mxu0 0.0
      %1547 = vmatprep.subr.mxu0 0.0
      %1548 = vmatpush1.msra.mxu0 0.0
      %1549 = vmatprep.mubr.f32.mxu0 0.0
      %1550 = vmatmul.mubr.f32.gmra.mrb[0].mxu0 %v1483
      %v1551 = vpop.f32.mrb[0].mxu0
      %v1552 = vadd.f32 0.0, %v1551
      %v1553 = vpop.f32.mrb[0].mxu0
      %1554 = vdwg.mxu0
      %v1555 = vpack.c.bf16 %v1552, %v1552
      %s1556 = scalar_lea.vmem %s5, 192
      %v1557 = vld [vmem:[%s1556] sm:$0xf]
      %v1558 = vld [vmem:[%s1556 + $0x4] sm:$0xf]
      %v1559 = vld [vmem:[%s1556 + $0x8] sm:$0xf]
      %v1560 = vld [vmem:[%s1556 + $0xc] sm:$0xf]
      %v1561 = vld [vmem:[%s1556 + $0x10] sm:$0xf]
      %v1562 = vld [vmem:[%s1556 + $0x14] sm:$0xf]
      %v1563 = vld [vmem:[%s1556 + $0x18] sm:$0xf]
      %v1564 = vld [vmem:[%s1556 + $0x1c] sm:$0xf]
      %v1565 = vld [vmem:[%s1556 + $0x20] sm:$0xf]
      %v1566 = vld [vmem:[%s1556 + $0x24] sm:$0xf]
      %v1567 = vld [vmem:[%s1556 + $0x28] sm:$0xf]
      %v1568 = vld [vmem:[%s1556 + $0x2c] sm:$0xf]
      %v1569 = vld [vmem:[%s1556 + $0x30] sm:$0xf]
      %v1570 = vld [vmem:[%s1556 + $0x34] sm:$0xf]
      %v1571 = vld [vmem:[%s1556 + $0x38] sm:$0xf]
      %v1572 = vld [vmem:[%s1556 + $0x3c] sm:$0xf]
      %v1589 = vunpack.c.l.b16 %v1557
      %v1590 = vunpack.c.l.b16 %v1558
      %v1591 = vunpack.c.l.b16 %v1559
      %v1592 = vunpack.c.l.b16 %v1560
      %v1593 = vunpack.c.l.b16 %v1561
      %v1594 = vunpack.c.l.b16 %v1562
      %v1595 = vunpack.c.l.b16 %v1563
      %v1596 = vunpack.c.l.b16 %v1564
      %v1597 = vunpack.c.l.b16 %v1565
      %v1598 = vunpack.c.l.b16 %v1566
      %v1599 = vunpack.c.l.b16 %v1567
      %v1600 = vunpack.c.l.b16 %v1568
      %v1601 = vunpack.c.l.b16 %v1569
      %v1602 = vunpack.c.l.b16 %v1570
      %v1603 = vunpack.c.l.b16 %v1571
      %v1604 = vunpack.c.l.b16 %v1572
      %v1605 = vpack.c.b16 %v1590, %v1589
      %v1606 = vpack.c.b16 %v1592, %v1591
      %v1607 = vpack.c.b16 %v1594, %v1593
      %v1608 = vpack.c.b16 %v1596, %v1595
      %v1609 = vpack.c.b16 %v1598, %v1597
      %v1610 = vpack.c.b16 %v1600, %v1599
      %v1611 = vpack.c.b16 %v1602, %v1601
      %v1612 = vpack.c.b16 %v1604, %v1603
      %1621 = vmatprep.subr.bf16.mxu0 0
      %1622 = vmatpush1.bf16.msra.mxu0 %v1605
      %1623 = vmatprep.subr.bf16.mxu0 0
      %1624 = vmatpush1.bf16.msra.mxu0 %v1606
      %1625 = vmatprep.subr.bf16.mxu0 0
      %1626 = vmatpush1.bf16.msra.mxu0 %v1607
      %1627 = vmatprep.subr.bf16.mxu0 0
      %1628 = vmatpush1.bf16.msra.mxu0 %v1608
      %1629 = vmatprep.subr.bf16.mxu0 0
      %1630 = vmatpush1.bf16.msra.mxu0 %v1609
      %1631 = vmatprep.subr.bf16.mxu0 0
      %1632 = vmatpush1.bf16.msra.mxu0 %v1610
      %1633 = vmatprep.subr.bf16.mxu0 0
      %1634 = vmatpush1.bf16.msra.mxu0 %v1611
      %1635 = vmatprep.subr.bf16.mxu0 0
      %1636 = vmatpush1.bf16.msra.mxu0 %v1612
      %1637 = vmatprep.subr.bf16.mxu0 0
      %1638 = vmatpush1.bf16.msra.mxu0 0
      %1639 = vmatprep.subr.bf16.mxu0 0
      %1640 = vmatpush1.bf16.msra.mxu0 0
      %1641 = vmatprep.subr.bf16.mxu0 0
      %1642 = vmatpush1.bf16.msra.mxu0 0
      %1643 = vmatprep.subr.bf16.mxu0 0
      %1644 = vmatpush1.bf16.msra.mxu0 0
      %1645 = vmatprep.subr.bf16.mxu0 0
      %1646 = vmatpush1.bf16.msra.mxu0 0
      %1647 = vmatprep.subr.bf16.mxu0 0
      %1648 = vmatpush1.bf16.msra.mxu0 0
      %1649 = vmatprep.subr.bf16.mxu0 0
      %1650 = vmatpush1.bf16.msra.mxu0 0
      %1651 = vmatprep.subr.bf16.mxu0 0
      %1652 = vmatpush1.bf16.msra.mxu0 0
      %1653 = vmatprep.mubr.bf16.mxu0 0
      %1654 = vmatmul.mubr.bf16.gmra.mrb[0].mxu0 %v1555
      %v1655 = vpop.f32.mrb[0].mxu0
      %v1656 = vadd.f32 0.0, %v1655
      %v1657 = vpop.f32.mrb[0].mxu0
      %v1658 = vpop.f32.mrb[0].mxu0
      %v1659 = vpop.f32.mrb[0].mxu0
      %1660 = vdwg.mxu0
      %v1661 = vadd.f32 %v1479, %v1656
      %v1662 = vld [vmem:[%s6] sm:$0x1]
      %v1664 = vlaneseq
      %v1665 = vshrl.u32 %v1664, 7
      %v1666 = vsub.s32 0, %v1665
      %v1667 = vrot.slane %v1662, %v1666
      %v1669 = vadd.f32 %v1661, %v1667
      %v1670 = vmax.f32 %v1669, 0.0
      %v1671 = vld [vmem:[%s7] sm:$0x3]
      %vm1672 = vcmask 31744
      %v1674 = vsel %vm1672, %v1671, 0
      %vm1676 = vcmask 1043456
      %v1678 = vsel %vm1676, %v1670, 0
      %1680 = vmatprep.subr.mxu0 0.0
      %1681 = vmatpush1.msra.mxu0 %v1678
      %1682 = vmatprep.subr.mxu0 0.0
      %1683 = vmatpush1.msra.mxu0 0.0
      %1684 = vmatprep.subr.mxu0 0.0
      %1685 = vmatpush1.msra.mxu0 0.0
      %1686 = vmatprep.subr.mxu0 0.0
      %1687 = vmatpush1.msra.mxu0 0.0
      %1688 = vmatprep.subr.mxu0 0.0
      %1689 = vmatpush1.msra.mxu0 0.0
      %1690 = vmatprep.subr.mxu0 0.0
      %1691 = vmatpush1.msra.mxu0 0.0
      %1692 = vmatprep.subr.mxu0 0.0
      %1693 = vmatpush1.msra.mxu0 0.0
      %1694 = vmatprep.subr.mxu0 0.0
      %1695 = vmatpush1.msra.mxu0 0.0
      %1696 = vmatprep.subr.mxu0 0.0
      %1697 = vmatpush1.msra.mxu0 0.0
      %1698 = vmatprep.subr.mxu0 0.0
      %1699 = vmatpush1.msra.mxu0 0.0
      %1700 = vmatprep.subr.mxu0 0.0
      %1701 = vmatpush1.msra.mxu0 0.0
      %1702 = vmatprep.subr.mxu0 0.0
      %1703 = vmatpush1.msra.mxu0 0.0
      %1704 = vmatprep.subr.mxu0 0.0
      %1705 = vmatpush1.msra.mxu0 0.0
      %1706 = vmatprep.subr.mxu0 0.0
      %1707 = vmatpush1.msra.mxu0 0.0
      %1708 = vmatprep.subr.mxu0 0.0
      %1709 = vmatpush1.msra.mxu0 0.0
      %1710 = vmatprep.subr.mxu0 0.0
      %1711 = vmatpush1.msra.mxu0 0.0
      %1712 = vmatprep.subr.mxu0 0.0
      %1713 = vmatpush1.msra.mxu0 0.0
      %1714 = vmatprep.subr.mxu0 0.0
      %1715 = vmatpush1.msra.mxu0 0.0
      %1716 = vmatprep.subr.mxu0 0.0
      %1717 = vmatpush1.msra.mxu0 0.0
      %1718 = vmatprep.subr.mxu0 0.0
      %1719 = vmatpush1.msra.mxu0 0.0
      %1720 = vmatprep.subr.mxu0 0.0
      %1721 = vmatpush1.msra.mxu0 0.0
      %1722 = vmatprep.subr.mxu0 0.0
      %1723 = vmatpush1.msra.mxu0 0.0
      %1724 = vmatprep.subr.mxu0 0.0
      %1725 = vmatpush1.msra.mxu0 0.0
      %1726 = vmatprep.subr.mxu0 0.0
      %1727 = vmatpush1.msra.mxu0 0.0
      %1728 = vmatprep.subr.mxu0 0.0
      %1729 = vmatpush1.msra.mxu0 0.0
      %1730 = vmatprep.subr.mxu0 0.0
      %1731 = vmatpush1.msra.mxu0 0.0
      %1732 = vmatprep.subr.mxu0 0.0
      %1733 = vmatpush1.msra.mxu0 0.0
      %1734 = vmatprep.subr.mxu0 0.0
      %1735 = vmatpush1.msra.mxu0 0.0
      %1736 = vmatprep.subr.mxu0 0.0
      %1737 = vmatpush1.msra.mxu0 0.0
      %1738 = vmatprep.subr.mxu0 0.0
      %1739 = vmatpush1.msra.mxu0 0.0
      %1740 = vmatprep.subr.mxu0 0.0
      %1741 = vmatpush1.msra.mxu0 0.0
      %1742 = vmatprep.subr.mxu0 0.0
      %1743 = vmatpush1.msra.mxu0 0.0
      %1744 = vmatprep.mubr.f32.mxu0 0.0
      %1745 = vmatmul.mubr.f32.gmra.mrb[0].mxu0 %v1674
      %v1746 = vpop.f32.mrb[0].mxu0
      %v1747 = vadd.f32 0.0, %v1746
      %v1748 = vpop.f32.mrb[0].mxu0
      %1749 = vdwg.mxu0
      %v1750 = vpack.c.bf16 %v1747, %v1747
      %v1751 = vld [vmem:[%s8] sm:$0xf]
      %v1752 = vld [vmem:[%s8 + $0x4] sm:$0xf]
      %v1753 = vld [vmem:[%s8 + $0x8] sm:$0xf]
      %v1754 = vld [vmem:[%s8 + $0xc] sm:$0xf]
      %v1755 = vld [vmem:[%s8 + $0x10] sm:$0xf]
      %v1756 = vld [vmem:[%s8 + $0x14] sm:$0xf]
      %v1757 = vld [vmem:[%s8 + $0x18] sm:$0xf]
      %v1758 = vld [vmem:[%s8 + $0x1c] sm:$0xf]
      %v1759 = vld [vmem:[%s8 + $0x20] sm:$0xf]
      %v1760 = vld [vmem:[%s8 + $0x24] sm:$0xf]
      %v1761 = vld [vmem:[%s8 + $0x28] sm:$0xf]
      %v1762 = vld [vmem:[%s8 + $0x2c] sm:$0xf]
      %v1763 = vld [vmem:[%s8 + $0x30] sm:$0xf]
      %v1764 = vld [vmem:[%s8 + $0x34] sm:$0xf]
      %v1765 = vld [vmem:[%s8 + $0x38] sm:$0xf]
      %v1766 = vld [vmem:[%s8 + $0x3c] sm:$0xf]
      %s1767 = scalar_lea.vmem %s7, 2
      %v1768 = vld [vmem:[%s1767] sm:$0x3]
      %v1770 = vsel %vm1672, %v1768, 0
      %1772 = vmatprep.subr.mxu0 0.0
      %1773 = vmatpush1.msra.mxu0 %v1678
      %1774 = vmatprep.subr.mxu0 0.0
      %1775 = vmatpush1.msra.mxu0 0.0
      %1776 = vmatprep.subr.mxu0 0.0
      %1777 = vmatpush1.msra.mxu0 0.0
      %1778 = vmatprep.subr.mxu0 0.0
      %1779 = vmatpush1.msra.mxu0 0.0
      %1780 = vmatprep.subr.mxu0 0.0
      %1781 = vmatpush1.msra.mxu0 0.0
      %1782 = vmatprep.subr.mxu0 0.0
      %1783 = vmatpush1.msra.mxu0 0.0
      %1784 = vmatprep.subr.mxu0 0.0
      %1785 = vmatpush1.msra.mxu0 0.0
      %1786 = vmatprep.subr.mxu0 0.0
      %1787 = vmatpush1.msra.mxu0 0.0
      %1788 = vmatprep.subr.mxu0 0.0
      %1789 = vmatpush1.msra.mxu0 0.0
      %1790 = vmatprep.subr.mxu0 0.0
      %1791 = vmatpush1.msra.mxu0 0.0
      %1792 = vmatprep.subr.mxu0 0.0
      %1793 = vmatpush1.msra.mxu0 0.0
      %1794 = vmatprep.subr.mxu0 0.0
      %1795 = vmatpush1.msra.mxu0 0.0
      %1796 = vmatprep.subr.mxu0 0.0
      %1797 = vmatpush1.msra.mxu0 0.0
      %1798 = vmatprep.subr.mxu0 0.0
      %1799 = vmatpush1.msra.mxu0 0.0
      %1800 = vmatprep.subr.mxu0 0.0
      %1801 = vmatpush1.msra.mxu0 0.0
      %1802 = vmatprep.subr.mxu0 0.0
      %1803 = vmatpush1.msra.mxu0 0.0
      %1804 = vmatprep.subr.mxu0 0.0
      %1805 = vmatpush1.msra.mxu0 0.0
      %1806 = vmatprep.subr.mxu0 0.0
      %1807 = vmatpush1.msra.mxu0 0.0
      %1808 = vmatprep.subr.mxu0 0.0
      %1809 = vmatpush1.msra.mxu0 0.0
      %1810 = vmatprep.subr.mxu0 0.0
      %1811 = vmatpush1.msra.mxu0 0.0
      %1812 = vmatprep.subr.mxu0 0.0
      %1813 = vmatpush1.msra.mxu0 0.0
      %1814 = vmatprep.subr.mxu0 0.0
      %1815 = vmatpush1.msra.mxu0 0.0
      %1816 = vmatprep.subr.mxu0 0.0
      %1817 = vmatpush1.msra.mxu0 0.0
      %1818 = vmatprep.subr.mxu0 0.0
      %1819 = vmatpush1.msra.mxu0 0.0
      %1820 = vmatprep.subr.mxu0 0.0
      %1821 = vmatpush1.msra.mxu0 0.0
      %1822 = vmatprep.subr.mxu0 0.0
      %1823 = vmatpush1.msra.mxu0 0.0
      %1824 = vmatprep.subr.mxu0 0.0
      %1825 = vmatpush1.msra.mxu0 0.0
      %1826 = vmatprep.subr.mxu0 0.0
      %1827 = vmatpush1.msra.mxu0 0.0
      %1828 = vmatprep.subr.mxu0 0.0
      %1829 = vmatpush1.msra.mxu0 0.0
      %1830 = vmatprep.subr.mxu0 0.0
      %1831 = vmatpush1.msra.mxu0 0.0
      %1832 = vmatprep.subr.mxu0 0.0
      %1833 = vmatpush1.msra.mxu0 0.0
      %1834 = vmatprep.subr.mxu0 0.0
      %1835 = vmatpush1.msra.mxu0 0.0
      %1836 = vmatprep.mubr.f32.mxu0 0.0
      %1837 = vmatmul.mubr.f32.gmra.mrb[0].mxu0 %v1770
      %v1838 = vpop.f32.mrb[0].mxu0
      %v1839 = vadd.f32 0.0, %v1838
      %v1840 = vpop.f32.mrb[0].mxu0
      %1841 = vdwg.mxu0
      %v1842 = vpack.c.bf16 %v1839, %v1839
      %s1843 = scalar_lea.vmem %s8, 64
      %v1844 = vld [vmem:[%s1843] sm:$0xf]
      %v1845 = vld [vmem:[%s1843 + $0x4] sm:$0xf]
      %v1846 = vld [vmem:[%s1843 + $0x8] sm:$0xf]
      %v1847 = vld [vmem:[%s1843 + $0xc] sm:$0xf]
      %v1848 = vld [vmem:[%s1843 + $0x10] sm:$0xf]
      %v1849 = vld [vmem:[%s1843 + $0x14] sm:$0xf]
      %v1850 = vld [vmem:[%s1843 + $0x18] sm:$0xf]
      %v1851 = vld [vmem:[%s1843 + $0x1c] sm:$0xf]
      %v1852 = vld [vmem:[%s1843 + $0x20] sm:$0xf]
      %v1853 = vld [vmem:[%s1843 + $0x24] sm:$0xf]
      %v1854 = vld [vmem:[%s1843 + $0x28] sm:$0xf]
      %v1855 = vld [vmem:[%s1843 + $0x2c] sm:$0xf]
      %v1856 = vld [vmem:[%s1843 + $0x30] sm:$0xf]
      %v1857 = vld [vmem:[%s1843 + $0x34] sm:$0xf]
      %v1858 = vld [vmem:[%s1843 + $0x38] sm:$0xf]
      %v1859 = vld [vmem:[%s1843 + $0x3c] sm:$0xf]
      %v1876 = vunpack.c.l.b16 %v1844
      %v1877 = vunpack.c.l.b16 %v1845
      %v1878 = vunpack.c.l.b16 %v1846
      %v1879 = vunpack.c.l.b16 %v1847
      %v1880 = vunpack.c.l.b16 %v1848
      %v1881 = vunpack.c.l.b16 %v1849
      %v1882 = vunpack.c.l.b16 %v1850
      %v1883 = vunpack.c.l.b16 %v1851
      %v1884 = vunpack.c.l.b16 %v1852
      %v1885 = vunpack.c.l.b16 %v1853
      %v1886 = vunpack.c.l.b16 %v1854
      %v1887 = vunpack.c.l.b16 %v1855
      %v1888 = vunpack.c.l.b16 %v1856
      %v1889 = vunpack.c.l.b16 %v1857
      %v1890 = vunpack.c.l.b16 %v1858
      %v1891 = vunpack.c.l.b16 %v1859
      %v1892 = vpack.c.b16 %v1877, %v1876
      %v1893 = vpack.c.b16 %v1879, %v1878
      %v1894 = vpack.c.b16 %v1881, %v1880
      %v1895 = vpack.c.b16 %v1883, %v1882
      %v1896 = vpack.c.b16 %v1885, %v1884
      %v1897 = vpack.c.b16 %v1887, %v1886
      %v1898 = vpack.c.b16 %v1889, %v1888
      %v1899 = vpack.c.b16 %v1891, %v1890
      %1908 = vmatprep.subr.bf16.mxu0 0
      %1909 = vmatpush1.bf16.msra.mxu0 %v1892
      %1910 = vmatprep.subr.bf16.mxu0 0
      %1911 = vmatpush1.bf16.msra.mxu0 %v1893
      %1912 = vmatprep.subr.bf16.mxu0 0
      %1913 = vmatpush1.bf16.msra.mxu0 %v1894
      %1914 = vmatprep.subr.bf16.mxu0 0
      %1915 = vmatpush1.bf16.msra.mxu0 %v1895
      %1916 = vmatprep.subr.bf16.mxu0 0
      %1917 = vmatpush1.bf16.msra.mxu0 %v1896
      %1918 = vmatprep.subr.bf16.mxu0 0
      %1919 = vmatpush1.bf16.msra.mxu0 %v1897
      %1920 = vmatprep.subr.bf16.mxu0 0
      %1921 = vmatpush1.bf16.msra.mxu0 %v1898
      %1922 = vmatprep.subr.bf16.mxu0 0
      %1923 = vmatpush1.bf16.msra.mxu0 %v1899
      %1924 = vmatprep.subr.bf16.mxu0 0
      %1925 = vmatpush1.bf16.msra.mxu0 0
      %1926 = vmatprep.subr.bf16.mxu0 0
      %1927 = vmatpush1.bf16.msra.mxu0 0
      %1928 = vmatprep.subr.bf16.mxu0 0
      %1929 = vmatpush1.bf16.msra.mxu0 0
      %1930 = vmatprep.subr.bf16.mxu0 0
      %1931 = vmatpush1.bf16.msra.mxu0 0
      %1932 = vmatprep.subr.bf16.mxu0 0
      %1933 = vmatpush1.bf16.msra.mxu0 0
      %1934 = vmatprep.subr.bf16.mxu0 0
      %1935 = vmatpush1.bf16.msra.mxu0 0
      %1936 = vmatprep.subr.bf16.mxu0 0
      %1937 = vmatpush1.bf16.msra.mxu0 0
      %1938 = vmatprep.subr.bf16.mxu0 0
      %1939 = vmatpush1.bf16.msra.mxu0 0
      %1940 = vmatprep.mubr.bf16.mxu0 0
      %1941 = vmatmul.mubr.bf16.gmra.mrb[0].mxu0 %v1842
      %v1942 = vpop.f32.mrb[0].mxu0
      %v1943 = vadd.f32 0.0, %v1942
      %v1944 = vpop.f32.mrb[0].mxu0
      %v1945 = vpop.f32.mrb[0].mxu0
      %v1946 = vpop.f32.mrb[0].mxu0
      %1947 = vdwg.mxu0
      %v1964 = vunpack.c.l.b16 %v1751
      %v1965 = vunpack.c.l.b16 %v1752
      %v1966 = vunpack.c.l.b16 %v1753
      %v1967 = vunpack.c.l.b16 %v1754
      %v1968 = vunpack.c.l.b16 %v1755
      %v1969 = vunpack.c.l.b16 %v1756
      %v1970 = vunpack.c.l.b16 %v1757
      %v1971 = vunpack.c.l.b16 %v1758
      %v1972 = vunpack.c.l.b16 %v1759
      %v1973 = vunpack.c.l.b16 %v1760
      %v1974 = vunpack.c.l.b16 %v1761
      %v1975 = vunpack.c.l.b16 %v1762
      %v1976 = vunpack.c.l.b16 %v1763
      %v1977 = vunpack.c.l.b16 %v1764
      %v1978 = vunpack.c.l.b16 %v1765
      %v1979 = vunpack.c.l.b16 %v1766
      %v1980 = vpack.c.b16 %v1965, %v1964
      %v1981 = vpack.c.b16 %v1967, %v1966
      %v1982 = vpack.c.b16 %v1969, %v1968
      %v1983 = vpack.c.b16 %v1971, %v1970
      %v1984 = vpack.c.b16 %v1973, %v1972
      %v1985 = vpack.c.b16 %v1975, %v1974
      %v1986 = vpack.c.b16 %v1977, %v1976
      %v1987 = vpack.c.b16 %v1979, %v1978
      %1996 = vmatprep.subr.bf16.mxu0 0
      %1997 = vmatpush1.bf16.msra.mxu0 %v1980
      %1998 = vmatprep.subr.bf16.mxu0 0
      %1999 = vmatpush1.bf16.msra.mxu0 %v1981
      %2000 = vmatprep.subr.bf16.mxu0 0
      %2001 = vmatpush1.bf16.msra.mxu0 %v1982
      %2002 = vmatprep.subr.bf16.mxu0 0
      %2003 = vmatpush1.bf16.msra.mxu0 %v1983
      %2004 = vmatprep.subr.bf16.mxu0 0
      %2005 = vmatpush1.bf16.msra.mxu0 %v1984
      %2006 = vmatprep.subr.bf16.mxu0 0
      %2007 = vmatpush1.bf16.msra.mxu0 %v1985
      %2008 = vmatprep.subr.bf16.mxu0 0
      %2009 = vmatpush1.bf16.msra.mxu0 %v1986
      %2010 = vmatprep.subr.bf16.mxu0 0
      %2011 = vmatpush1.bf16.msra.mxu0 %v1987
      %2012 = vmatprep.subr.bf16.mxu0 0
      %2013 = vmatpush1.bf16.msra.mxu0 0
      %2014 = vmatprep.subr.bf16.mxu0 0
      %2015 = vmatpush1.bf16.msra.mxu0 0
      %2016 = vmatprep.subr.bf16.mxu0 0
      %2017 = vmatpush1.bf16.msra.mxu0 0
      %2018 = vmatprep.subr.bf16.mxu0 0
      %2019 = vmatpush1.bf16.msra.mxu0 0
      %2020 = vmatprep.subr.bf16.mxu0 0
      %2021 = vmatpush1.bf16.msra.mxu0 0
      %2022 = vmatprep.subr.bf16.mxu0 0
      %2023 = vmatpush1.bf16.msra.mxu0 0
      %2024 = vmatprep.subr.bf16.mxu0 0
      %2025 = vmatpush1.bf16.msra.mxu0 0
      %2026 = vmatprep.subr.bf16.mxu0 0
      %2027 = vmatpush1.bf16.msra.mxu0 0
      %2028 = vmatprep.mubr.bf16.mxu0 0
      %2029 = vmatmul.mubr.bf16.gmra.mrb[0].mxu0 %v1750
      %v2030 = vpop.f32.mrb[0].mxu0
      %v2031 = vadd.f32 %v1943, %v2030
      %v2032 = vpop.f32.mrb[0].mxu0
      %v2033 = vpop.f32.mrb[0].mxu0
      %v2034 = vpop.f32.mrb[0].mxu0
      %2035 = vdwg.mxu0
      %s2036 = scalar_lea.vmem %s7, 4
      %v2037 = vld [vmem:[%s2036] sm:$0x3]
      %v2039 = vsel %vm1672, %v2037, 0
      %2041 = vmatprep.subr.mxu0 0.0
      %2042 = vmatpush1.msra.mxu0 %v1678
      %2043 = vmatprep.subr.mxu0 0.0
      %2044 = vmatpush1.msra.mxu0 0.0
      %2045 = vmatprep.subr.mxu0 0.0
      %2046 = vmatpush1.msra.mxu0 0.0
      %2047 = vmatprep.subr.mxu0 0.0
      %2048 = vmatpush1.msra.mxu0 0.0
      %2049 = vmatprep.subr.mxu0 0.0
      %2050 = vmatpush1.msra.mxu0 0.0
      %2051 = vmatprep.subr.mxu0 0.0
      %2052 = vmatpush1.msra.mxu0 0.0
      %2053 = vmatprep.subr.mxu0 0.0
      %2054 = vmatpush1.msra.mxu0 0.0
      %2055 = vmatprep.subr.mxu0 0.0
      %2056 = vmatpush1.msra.mxu0 0.0
      %2057 = vmatprep.subr.mxu0 0.0
      %2058 = vmatpush1.msra.mxu0 0.0
      %2059 = vmatprep.subr.mxu0 0.0
      %2060 = vmatpush1.msra.mxu0 0.0
      %2061 = vmatprep.subr.mxu0 0.0
      %2062 = vmatpush1.msra.mxu0 0.0
      %2063 = vmatprep.subr.mxu0 0.0
      %2064 = vmatpush1.msra.mxu0 0.0
      %2065 = vmatprep.subr.mxu0 0.0
      %2066 = vmatpush1.msra.mxu0 0.0
      %2067 = vmatprep.subr.mxu0 0.0
      %2068 = vmatpush1.msra.mxu0 0.0
      %2069 = vmatprep.subr.mxu0 0.0
      %2070 = vmatpush1.msra.mxu0 0.0
      %2071 = vmatprep.subr.mxu0 0.0
      %2072 = vmatpush1.msra.mxu0 0.0
      %2073 = vmatprep.subr.mxu0 0.0
      %2074 = vmatpush1.msra.mxu0 0.0
      %2075 = vmatprep.subr.mxu0 0.0
      %2076 = vmatpush1.msra.mxu0 0.0
      %2077 = vmatprep.subr.mxu0 0.0
      %2078 = vmatpush1.msra.mxu0 0.0
      %2079 = vmatprep.subr.mxu0 0.0
      %2080 = vmatpush1.msra.mxu0 0.0
      %2081 = vmatprep.subr.mxu0 0.0
      %2082 = vmatpush1.msra.mxu0 0.0
      %2083 = vmatprep.subr.mxu0 0.0
      %2084 = vmatpush1.msra.mxu0 0.0
      %2085 = vmatprep.subr.mxu0 0.0
      %2086 = vmatpush1.msra.mxu0 0.0
      %2087 = vmatprep.subr.mxu0 0.0
      %2088 = vmatpush1.msra.mxu0 0.0
      %2089 = vmatprep.subr.mxu0 0.0
      %2090 = vmatpush1.msra.mxu0 0.0
      %2091 = vmatprep.subr.mxu0 0.0
      %2092 = vmatpush1.msra.mxu0 0.0
      %2093 = vmatprep.subr.mxu0 0.0
      %2094 = vmatpush1.msra.mxu0 0.0
      %2095 = vmatprep.subr.mxu0 0.0
      %2096 = vmatpush1.msra.mxu0 0.0
      %2097 = vmatprep.subr.mxu0 0.0
      %2098 = vmatpush1.msra.mxu0 0.0
      %2099 = vmatprep.subr.mxu0 0.0
      %2100 = vmatpush1.msra.mxu0 0.0
      %2101 = vmatprep.subr.mxu0 0.0
      %2102 = vmatpush1.msra.mxu0 0.0
      %2103 = vmatprep.subr.mxu0 0.0
      %2104 = vmatpush1.msra.mxu0 0.0
      %2105 = vmatprep.mubr.f32.mxu0 0.0
      %2106 = vmatmul.mubr.f32.gmra.mrb[0].mxu0 %v2039
      %v2107 = vpop.f32.mrb[0].mxu0
      %v2108 = vadd.f32 0.0, %v2107
      %v2109 = vpop.f32.mrb[0].mxu0
      %2110 = vdwg.mxu0
      %v2111 = vpack.c.bf16 %v2108, %v2108
      %s2112 = scalar_lea.vmem %s8, 128
      %v2113 = vld [vmem:[%s2112] sm:$0xf]
      %v2114 = vld [vmem:[%s2112 + $0x4] sm:$0xf]
      %v2115 = vld [vmem:[%s2112 + $0x8] sm:$0xf]
      %v2116 = vld [vmem:[%s2112 + $0xc] sm:$0xf]
      %v2117 = vld [vmem:[%s2112 + $0x10] sm:$0xf]
      %v2118 = vld [vmem:[%s2112 + $0x14] sm:$0xf]
      %v2119 = vld [vmem:[%s2112 + $0x18] sm:$0xf]
      %v2120 = vld [vmem:[%s2112 + $0x1c] sm:$0xf]
      %v2121 = vld [vmem:[%s2112 + $0x20] sm:$0xf]
      %v2122 = vld [vmem:[%s2112 + $0x24] sm:$0xf]
      %v2123 = vld [vmem:[%s2112 + $0x28] sm:$0xf]
      %v2124 = vld [vmem:[%s2112 + $0x2c] sm:$0xf]
      %v2125 = vld [vmem:[%s2112 + $0x30] sm:$0xf]
      %v2126 = vld [vmem:[%s2112 + $0x34] sm:$0xf]
      %v2127 = vld [vmem:[%s2112 + $0x38] sm:$0xf]
      %v2128 = vld [vmem:[%s2112 + $0x3c] sm:$0xf]
      %v2145 = vunpack.c.l.b16 %v2113
      %v2146 = vunpack.c.l.b16 %v2114
      %v2147 = vunpack.c.l.b16 %v2115
      %v2148 = vunpack.c.l.b16 %v2116
      %v2149 = vunpack.c.l.b16 %v2117
      %v2150 = vunpack.c.l.b16 %v2118
      %v2151 = vunpack.c.l.b16 %v2119
      %v2152 = vunpack.c.l.b16 %v2120
      %v2153 = vunpack.c.l.b16 %v2121
      %v2154 = vunpack.c.l.b16 %v2122
      %v2155 = vunpack.c.l.b16 %v2123
      %v2156 = vunpack.c.l.b16 %v2124
      %v2157 = vunpack.c.l.b16 %v2125
      %v2158 = vunpack.c.l.b16 %v2126
      %v2159 = vunpack.c.l.b16 %v2127
      %v2160 = vunpack.c.l.b16 %v2128
      %v2161 = vpack.c.b16 %v2146, %v2145
      %v2162 = vpack.c.b16 %v2148, %v2147
      %v2163 = vpack.c.b16 %v2150, %v2149
      %v2164 = vpack.c.b16 %v2152, %v2151
      %v2165 = vpack.c.b16 %v2154, %v2153
      %v2166 = vpack.c.b16 %v2156, %v2155
      %v2167 = vpack.c.b16 %v2158, %v2157
      %v2168 = vpack.c.b16 %v2160, %v2159
      %2177 = vmatprep.subr.bf16.mxu0 0
      %2178 = vmatpush1.bf16.msra.mxu0 %v2161
      %2179 = vmatprep.subr.bf16.mxu0 0
      %2180 = vmatpush1.bf16.msra.mxu0 %v2162
      %2181 = vmatprep.subr.bf16.mxu0 0
      %2182 = vmatpush1.bf16.msra.mxu0 %v2163
      %2183 = vmatprep.subr.bf16.mxu0 0
      %2184 = vmatpush1.bf16.msra.mxu0 %v2164
      %2185 = vmatprep.subr.bf16.mxu0 0
      %2186 = vmatpush1.bf16.msra.mxu0 %v2165
      %2187 = vmatprep.subr.bf16.mxu0 0
      %2188 = vmatpush1.bf16.msra.mxu0 %v2166
      %2189 = vmatprep.subr.bf16.mxu0 0
      %2190 = vmatpush1.bf16.msra.mxu0 %v2167
      %2191 = vmatprep.subr.bf16.mxu0 0
      %2192 = vmatpush1.bf16.msra.mxu0 %v2168
      %2193 = vmatprep.subr.bf16.mxu0 0
      %2194 = vmatpush1.bf16.msra.mxu0 0
      %2195 = vmatprep.subr.bf16.mxu0 0
      %2196 = vmatpush1.bf16.msra.mxu0 0
      %2197 = vmatprep.subr.bf16.mxu0 0
      %2198 = vmatpush1.bf16.msra.mxu0 0
      %2199 = vmatprep.subr.bf16.mxu0 0
      %2200 = vmatpush1.bf16.msra.mxu0 0
      %2201 = vmatprep.subr.bf16.mxu0 0
      %2202 = vmatpush1.bf16.msra.mxu0 0
      %2203 = vmatprep.subr.bf16.mxu0 0
      %2204 = vmatpush1.bf16.msra.mxu0 0
      %2205 = vmatprep.subr.bf16.mxu0 0
      %2206 = vmatpush1.bf16.msra.mxu0 0
      %2207 = vmatprep.subr.bf16.mxu0 0
      %2208 = vmatpush1.bf16.msra.mxu0 0
      %2209 = vmatprep.mubr.bf16.mxu0 0
      %2210 = vmatmul.mubr.bf16.gmra.mrb[0].mxu0 %v2111
      %v2211 = vpop.f32.mrb[0].mxu0
      %v2212 = vadd.f32 0.0, %v2211
      %v2213 = vpop.f32.mrb[0].mxu0
      %v2214 = vpop.f32.mrb[0].mxu0
      %v2215 = vpop.f32.mrb[0].mxu0
      %2216 = vdwg.mxu0
      %v2217 = vadd.f32 %v2031, %v2212
      %s2218 = scalar_lea.vmem %s7, 6
      %v2219 = vld [vmem:[%s2218] sm:$0x3]
      %v2221 = vsel %vm1672, %v2219, 0
      %2223 = vmatprep.subr.mxu0 0.0
      %2224 = vmatpush1.msra.mxu0 %v1678
      %2225 = vmatprep.subr.mxu0 0.0
      %2226 = vmatpush1.msra.mxu0 0.0
      %2227 = vmatprep.subr.mxu0 0.0
      %2228 = vmatpush1.msra.mxu0 0.0
      %2229 = vmatprep.subr.mxu0 0.0
      %2230 = vmatpush1.msra.mxu0 0.0
      %2231 = vmatprep.subr.mxu0 0.0
      %2232 = vmatpush1.msra.mxu0 0.0
      %2233 = vmatprep.subr.mxu0 0.0
      %2234 = vmatpush1.msra.mxu0 0.0
      %2235 = vmatprep.subr.mxu0 0.0
      %2236 = vmatpush1.msra.mxu0 0.0
      %2237 = vmatprep.subr.mxu0 0.0
      %2238 = vmatpush1.msra.mxu0 0.0
      %2239 = vmatprep.subr.mxu0 0.0
      %2240 = vmatpush1.msra.mxu0 0.0
      %2241 = vmatprep.subr.mxu0 0.0
      %2242 = vmatpush1.msra.mxu0 0.0
      %2243 = vmatprep.subr.mxu0 0.0
      %2244 = vmatpush1.msra.mxu0 0.0
      %2245 = vmatprep.subr.mxu0 0.0
      %2246 = vmatpush1.msra.mxu0 0.0
      %2247 = vmatprep.subr.mxu0 0.0
      %2248 = vmatpush1.msra.mxu0 0.0
      %2249 = vmatprep.subr.mxu0 0.0
      %2250 = vmatpush1.msra.mxu0 0.0
      %2251 = vmatprep.subr.mxu0 0.0
      %2252 = vmatpush1.msra.mxu0 0.0
      %2253 = vmatprep.subr.mxu0 0.0
      %2254 = vmatpush1.msra.mxu0 0.0
      %2255 = vmatprep.subr.mxu0 0.0
      %2256 = vmatpush1.msra.mxu0 0.0
      %2257 = vmatprep.subr.mxu0 0.0
      %2258 = vmatpush1.msra.mxu0 0.0
      %2259 = vmatprep.subr.mxu0 0.0
      %2260 = vmatpush1.msra.mxu0 0.0
      %2261 = vmatprep.subr.mxu0 0.0
      %2262 = vmatpush1.msra.mxu0 0.0
      %2263 = vmatprep.subr.mxu0 0.0
      %2264 = vmatpush1.msra.mxu0 0.0
      %2265 = vmatprep.subr.mxu0 0.0
      %2266 = vmatpush1.msra.mxu0 0.0
      %2267 = vmatprep.subr.mxu0 0.0
      %2268 = vmatpush1.msra.mxu0 0.0
      %2269 = vmatprep.subr.mxu0 0.0
      %2270 = vmatpush1.msra.mxu0 0.0
      %2271 = vmatprep.subr.mxu0 0.0
      %2272 = vmatpush1.msra.mxu0 0.0
      %2273 = vmatprep.subr.mxu0 0.0
      %2274 = vmatpush1.msra.mxu0 0.0
      %2275 = vmatprep.subr.mxu0 0.0
      %2276 = vmatpush1.msra.mxu0 0.0
      %2277 = vmatprep.subr.mxu0 0.0
      %2278 = vmatpush1.msra.mxu0 0.0
      %2279 = vmatprep.subr.mxu0 0.0
      %2280 = vmatpush1.msra.mxu0 0.0
      %2281 = vmatprep.subr.mxu0 0.0
      %2282 = vmatpush1.msra.mxu0 0.0
      %2283 = vmatprep.subr.mxu0 0.0
      %2284 = vmatpush1.msra.mxu0 0.0
      %2285 = vmatprep.subr.mxu0 0.0
      %2286 = vmatpush1.msra.mxu0 0.0
      %2287 = vmatprep.mubr.f32.mxu0 0.0
      %2288 = vmatmul.mubr.f32.gmra.mrb[0].mxu0 %v2221
      %v2289 = vpop.f32.mrb[0].mxu0
      %v2290 = vadd.f32 0.0, %v2289
      %v2291 = vpop.f32.mrb[0].mxu0
      %2292 = vdwg.mxu0
      %v2293 = vpack.c.bf16 %v2290, %v2290
      %s2294 = scalar_lea.vmem %s8, 192
      %v2295 = vld [vmem:[%s2294] sm:$0xf]
      %v2296 = vld [vmem:[%s2294 + $0x4] sm:$0xf]
      %v2297 = vld [vmem:[%s2294 + $0x8] sm:$0xf]
      %v2298 = vld [vmem:[%s2294 + $0xc] sm:$0xf]
      %v2299 = vld [vmem:[%s2294 + $0x10] sm:$0xf]
      %v2300 = vld [vmem:[%s2294 + $0x14] sm:$0xf]
      %v2301 = vld [vmem:[%s2294 + $0x18] sm:$0xf]
      %v2302 = vld [vmem:[%s2294 + $0x1c] sm:$0xf]
      %v2303 = vld [vmem:[%s2294 + $0x20] sm:$0xf]
      %v2304 = vld [vmem:[%s2294 + $0x24] sm:$0xf]
      %v2305 = vld [vmem:[%s2294 + $0x28] sm:$0xf]
      %v2306 = vld [vmem:[%s2294 + $0x2c] sm:$0xf]
      %v2307 = vld [vmem:[%s2294 + $0x30] sm:$0xf]
      %v2308 = vld [vmem:[%s2294 + $0x34] sm:$0xf]
      %v2309 = vld [vmem:[%s2294 + $0x38] sm:$0xf]
      %v2310 = vld [vmem:[%s2294 + $0x3c] sm:$0xf]
      %v2327 = vunpack.c.l.b16 %v2295
      %v2328 = vunpack.c.l.b16 %v2296
      %v2329 = vunpack.c.l.b16 %v2297
      %v2330 = vunpack.c.l.b16 %v2298
      %v2331 = vunpack.c.l.b16 %v2299
      %v2332 = vunpack.c.l.b16 %v2300
      %v2333 = vunpack.c.l.b16 %v2301
      %v2334 = vunpack.c.l.b16 %v2302
      %v2335 = vunpack.c.l.b16 %v2303
      %v2336 = vunpack.c.l.b16 %v2304
      %v2337 = vunpack.c.l.b16 %v2305
      %v2338 = vunpack.c.l.b16 %v2306
      %v2339 = vunpack.c.l.b16 %v2307
      %v2340 = vunpack.c.l.b16 %v2308
      %v2341 = vunpack.c.l.b16 %v2309
      %v2342 = vunpack.c.l.b16 %v2310
      %v2343 = vpack.c.b16 %v2328, %v2327
      %v2344 = vpack.c.b16 %v2330, %v2329
      %v2345 = vpack.c.b16 %v2332, %v2331
      %v2346 = vpack.c.b16 %v2334, %v2333
      %v2347 = vpack.c.b16 %v2336, %v2335
      %v2348 = vpack.c.b16 %v2338, %v2337
      %v2349 = vpack.c.b16 %v2340, %v2339
      %v2350 = vpack.c.b16 %v2342, %v2341
      %2359 = vmatprep.subr.bf16.mxu0 0
      %2360 = vmatpush1.bf16.msra.mxu0 %v2343
      %2361 = vmatprep.subr.bf16.mxu0 0
      %2362 = vmatpush1.bf16.msra.mxu0 %v2344
      %2363 = vmatprep.subr.bf16.mxu0 0
      %2364 = vmatpush1.bf16.msra.mxu0 %v2345
      %2365 = vmatprep.subr.bf16.mxu0 0
      %2366 = vmatpush1.bf16.msra.mxu0 %v2346
      %2367 = vmatprep.subr.bf16.mxu0 0
      %2368 = vmatpush1.bf16.msra.mxu0 %v2347
      %2369 = vmatprep.subr.bf16.mxu0 0
      %2370 = vmatpush1.bf16.msra.mxu0 %v2348
      %2371 = vmatprep.subr.bf16.mxu0 0
      %2372 = vmatpush1.bf16.msra.mxu0 %v2349
      %2373 = vmatprep.subr.bf16.mxu0 0
      %2374 = vmatpush1.bf16.msra.mxu0 %v2350
      %2375 = vmatprep.subr.bf16.mxu0 0
      %2376 = vmatpush1.bf16.msra.mxu0 0
      %2377 = vmatprep.subr.bf16.mxu0 0
      %2378 = vmatpush1.bf16.msra.mxu0 0
      %2379 = vmatprep.subr.bf16.mxu0 0
      %2380 = vmatpush1.bf16.msra.mxu0 0
      %2381 = vmatprep.subr.bf16.mxu0 0
      %2382 = vmatpush1.bf16.msra.mxu0 0
      %2383 = vmatprep.subr.bf16.mxu0 0
      %2384 = vmatpush1.bf16.msra.mxu0 0
      %2385 = vmatprep.subr.bf16.mxu0 0
      %2386 = vmatpush1.bf16.msra.mxu0 0
      %2387 = vmatprep.subr.bf16.mxu0 0
      %2388 = vmatpush1.bf16.msra.mxu0 0
      %2389 = vmatprep.subr.bf16.mxu0 0
      %2390 = vmatpush1.bf16.msra.mxu0 0
      %2391 = vmatprep.mubr.bf16.mxu0 0
      %2392 = vmatmul.mubr.bf16.gmra.mrb[0].mxu0 %v2293
      %v2393 = vpop.f32.mrb[0].mxu0
      %v2394 = vadd.f32 0.0, %v2393
      %v2395 = vpop.f32.mrb[0].mxu0
      %v2396 = vpop.f32.mrb[0].mxu0
      %v2397 = vpop.f32.mrb[0].mxu0
      %2398 = vdwg.mxu0
      %v2399 = vadd.f32 %v2217, %v2394
      %v2400 = vld [vmem:[%s9] sm:$0x1]
      %v2402 = vlaneseq
      %v2403 = vshrl.u32 %v2402, 7
      %v2404 = vsub.s32 0, %v2403
      %v2405 = vrot.slane %v2400, %v2404
      %v2407 = vadd.f32 %v2399, %v2405
      %v2408 = vmax.f32 %v2407, 0.0
      %v2409 = vpack.c.bf16 %v2408, %v2408
      %v2410 = vld [vmem:[%s10] sm:$0xf]
      %v2411 = vld [vmem:[%s10 + $0x4] sm:$0xf]
      %v2412 = vld [vmem:[%s10 + $0x8] sm:$0xf]
      %v2413 = vld [vmem:[%s10 + $0xc] sm:$0xf]
      %v2414 = vld [vmem:[%s10 + $0x10] sm:$0xf]
      %v2415 = vld [vmem:[%s10 + $0x14] sm:$0xf]
      %v2416 = vld [vmem:[%s10 + $0x18] sm:$0xf]
      %v2417 = vld [vmem:[%s10 + $0x1c] sm:$0xf]
      %v2418 = vld [vmem:[%s10 + $0x20] sm:$0xf]
      %v2419 = vld [vmem:[%s10 + $0x24] sm:$0xf]
      %v2420 = vld [vmem:[%s10 + $0x28] sm:$0xf]
      %v2421 = vld [vmem:[%s10 + $0x2c] sm:$0xf]
      %v2422 = vld [vmem:[%s11] sm:$0x1]
      %v2424 = vlaneseq
      %v2425 = vshrl.u32 %v2424, 7
      %v2426 = vsub.s32 0, %v2425
      %v2427 = vrot.slane %v2422, %v2426
      %v2441 = vunpack.c.l.b16 %v2410
      %v2442 = vunpack.c.l.b16 %v2411
      %v2443 = vunpack.c.l.b16 %v2412
      %v2444 = vunpack.c.l.b16 %v2413
      %v2445 = vunpack.c.l.b16 %v2414
      %v2446 = vunpack.c.l.b16 %v2415
      %v2447 = vunpack.c.l.b16 %v2416
      %v2448 = vunpack.c.l.b16 %v2417
      %v2449 = vunpack.c.l.b16 %v2418
      %v2450 = vunpack.c.l.b16 %v2419
      %v2451 = vunpack.c.l.b16 %v2420
      %v2452 = vunpack.c.l.b16 %v2421
      %v2453 = vpack.c.b16 %v2442, %v2441
      %v2454 = vpack.c.b16 %v2444, %v2443
      %v2455 = vpack.c.b16 %v2446, %v2445
      %v2456 = vpack.c.b16 %v2448, %v2447
      %v2457 = vpack.c.b16 %v2450, %v2449
      %v2458 = vpack.c.b16 %v2452, %v2451
      %vm2465 = vcmask 785408
      %v2467 = vsel %vm2465, %v2409, 0
      %2469 = vmatprep.subr.bf16.mxu0 0
      %2470 = vmatpush1.bf16.msra.mxu0 %v2453
      %2471 = vmatprep.subr.bf16.mxu0 0
      %2472 = vmatpush1.bf16.msra.mxu0 %v2454
      %2473 = vmatprep.subr.bf16.mxu0 0
      %2474 = vmatpush1.bf16.msra.mxu0 %v2455
      %2475 = vmatprep.subr.bf16.mxu0 0
      %2476 = vmatpush1.bf16.msra.mxu0 %v2456
      %2477 = vmatprep.subr.bf16.mxu0 0
      %2478 = vmatpush1.bf16.msra.mxu0 %v2457
      %2479 = vmatprep.subr.bf16.mxu0 0
      %2480 = vmatpush1.bf16.msra.mxu0 %v2458
      %2481 = vmatprep.subr.bf16.mxu0 0
      %2482 = vmatpush1.bf16.msra.mxu0 0
      %2483 = vmatprep.subr.bf16.mxu0 0
      %2484 = vmatpush1.bf16.msra.mxu0 0
      %2485 = vmatprep.subr.bf16.mxu0 0
      %2486 = vmatpush1.bf16.msra.mxu0 0
      %2487 = vmatprep.subr.bf16.mxu0 0
      %2488 = vmatpush1.bf16.msra.mxu0 0
      %2489 = vmatprep.subr.bf16.mxu0 0
      %2490 = vmatpush1.bf16.msra.mxu0 0
      %2491 = vmatprep.subr.bf16.mxu0 0
      %2492 = vmatpush1.bf16.msra.mxu0 0
      %2493 = vmatprep.subr.bf16.mxu0 0
      %2494 = vmatpush1.bf16.msra.mxu0 0
      %2495 = vmatprep.subr.bf16.mxu0 0
      %2496 = vmatpush1.bf16.msra.mxu0 0
      %2497 = vmatprep.subr.bf16.mxu0 0
      %2498 = vmatpush1.bf16.msra.mxu0 0
      %2499 = vmatprep.subr.bf16.mxu0 0
      %2500 = vmatpush1.bf16.msra.mxu0 0
      %2501 = vmatprep.mubr.bf16.mxu0 0
      %2502 = vmatmul.mubr.bf16.gmra.mrb[0].mxu0 %v2467
      %v2503 = vpop.f32.mrb[0].mxu0
      %v2504 = vadd.f32 %v2427, %v2503
      %v2505 = vpop.f32.mrb[0].mxu0
      %v2506 = vpop.f32.mrb[0].mxu0
      %v2507 = vpop.f32.mrb[0].mxu0
      %2508 = vdwg.mxu0
      %vm2509 = vcmask 517120
      %2510 = vst.msk [vmem:[%s411] sm:$0x3] %vm2509, %v2504
      %p2511 = scmp.lt.s32.totalorder %s23, 1
      %s2512 = scalar_select %p2511, %s23, 1
      %s2513 = smul.addr %s2512, 2
      %s2514 = scalar_lea.vmem %s12, %s2513
      // Predicated region
      $region69: #{encoder_forward.1} parent=67 // pred_check
        %p2515 = pneg %p298
      $region70: #{encoder_forward.1} parent=67 // pred_check_branch
        %2517 = sbr.rel (%p2515) target = $region72
      $region71: #{encoder_forward.1} parent=67 // pred_region
        _
      $region72: #{encoder_forward.1} parent=67 // pred_fallthru
        _
    $region68: #{encoder_forward.1} parent=5 // pred_fallthru
      _
    %p2518 = scmp.le.s32.totalorder 2, %s18
    // Predicated region
    $region73: #{encoder_forward.1} parent=5 // pred_check
      %p2519 = pneg %p2518
    $region74: #{encoder_forward.1} parent=5 // pred_check_branch
      %2521 = sbr.rel (%p2519) target = $region76
    $region75: #{encoder_forward.1} parent=5 // pred_region
      %s2522 = ssub.s32 %s18, 2
      // Predicated region
      $region77: #{encoder_forward.1} parent=75 // pred_check
        %p2523 = pneg %p304
      $region78: #{encoder_forward.1} parent=75 // pred_check_branch
        %2525 = sbr.rel (%p2523) target = $region80
      $region79: #{encoder_forward.1} parent=75 // pred_region
        %p2526 = scmp.lt.s32.totalorder %s24, 1
        %s2527 = scalar_select %p2526, %s24, 1
        %s2528 = smul.addr %s2527, 2
        %s2529 = scalar_lea.vmem %s12, %s2528
      $region80: #{encoder_forward.1} parent=75 // pred_fallthru
        _
    $region76: #{encoder_forward.1} parent=5 // pred_fallthru
      _
  $region6: #{encoder_forward.1} parent=0 // loop_footer
    %s22 = sadd.s32 1, %s18
  $region7: #{encoder_forward.1} parent=0 // loop_footer_branch
    %17 = sbr.rel target = $region3
  $region8: #{encoder_forward.1} parent=0 // loop_exit
    _

</llo_original>
